<compile_context>
chip_gen: v6e
topology: v6e:2x2x1
jax: 0.10.0
libtpu: 0.0.40
codegen_flags: <defaults>
</compile_context>

<pallas_src>
import functools

import jax
import jax.numpy as jnp
from jax.experimental import pallas as pl
from jax.experimental.pallas import tpu as pltpu


_VMEM_LIMIT = 32 * 1024 * 1024  # within v7x's 64 MiB physical VMEM


def _round_up(x, m):
    return ((x + m - 1) // m) * m


def _bf16(w):
    return w.astype(jnp.bfloat16)


# ----------------------------------------------------------------------------
# Kernel 1: fused body -> head -> classifier -> ProjectionHead BN statistics.
# Channels-first: each stage is  W (cout, cin) @ x (cin, tm)  -> (cout, tm),
# so the large spatial tile (tm, multiple of 128) is the lane dimension of
# every store.  Per-image BN sum / sum-of-squares accumulate into (hc, 1)
# output blocks whose index is constant along the tile axis.
# ----------------------------------------------------------------------------
def _fused_backbone_kernel(x_ref, bw_ref, bb_ref, hw_ref, hb_ref,
                           cw_ref, cb_ref, pw1_ref, pb1_ref,
                           xb_ref, out_ref, lg_ref, ssum_ref, ssq_ref,
                           *, valid_cols, need_mask):
    i = pl.program_id(1)

    x = x_ref[0].astype(jnp.bfloat16)                        # (cin, tm)

    xb = jnp.dot(bw_ref[...], x, preferred_element_type=jnp.float32)
    xb = jnp.maximum(xb + bb_ref[...], 0.0)                   # (bc, tm)
    xb_ref[0] = xb.astype(xb_ref.dtype)

    xb_bf = xb.astype(jnp.bfloat16)
    out = jnp.dot(hw_ref[...], xb_bf, preferred_element_type=jnp.float32)
    out = jnp.maximum(out + hb_ref[...], 0.0)                 # (hc, tm)
    out_ref[0] = out.astype(out_ref.dtype)

    out_bf = out.astype(jnp.bfloat16)
    lg_ref[0] = (jnp.dot(cw_ref[...], out_bf, preferred_element_type=jnp.float32)
                 + cb_ref[...])                               # (nc, tm)

    # --- ProjectionHead BatchNorm statistics (pass 1), fused.
    h1 = (jnp.dot(pw1_ref[...], out_bf, preferred_element_type=jnp.float32)
          + pb1_ref[...])                                     # (hc, tm)
    if need_mask:  # zero padded lanes so they do not pollute the statistics
        col = jax.lax.broadcasted_iota(jnp.int32, h1.shape, 1) + i * h1.shape[1]
        h1 = jnp.where(col < valid_cols, h1, 0.0)

    @pl.when(i == 0)
    def _():
        ssum_ref[...] = jnp.zeros_like(ssum_ref)
        ssq_ref[...] = jnp.zeros_like(ssq_ref)

    ssum_ref[0] = ssum_ref[0] + jnp.sum(h1, axis=1, keepdims=True)
    ssq_ref[0] = ssq_ref[0] + jnp.sum(h1 * h1, axis=1, keepdims=True)


def fused_backbone(x_rows, params, *, tm, valid_cols):
    N, cin, S_pad = x_rows.shape
    nt = S_pad // tm
    bc = params["body_w"].shape[0]
    hc = params["head_w"].shape[0]
    nc = params["cls_w"].shape[0]

    row_spec = lambda c: pl.BlockSpec((1, c, tm), lambda n, i: (n, 0, i))
    w_spec = lambda r, c: pl.BlockSpec((r, c), lambda n, i: (0, 0))
    stat_spec = pl.BlockSpec((1, hc, 1), lambda n, i: (n, 0, 0))

    kernel = functools.partial(_fused_backbone_kernel,
                               valid_cols=valid_cols,
                               need_mask=(S_pad != valid_cols))

    return pl.pallas_call(
        kernel,
        out_shape=(
            jax.ShapeDtypeStruct((N, bc, S_pad), jnp.bfloat16),
            jax.ShapeDtypeStruct((N, hc, S_pad), jnp.bfloat16),
            jax.ShapeDtypeStruct((N, nc, S_pad), jnp.float32),
            jax.ShapeDtypeStruct((N, hc, 1), jnp.float32),
            jax.ShapeDtypeStruct((N, hc, 1), jnp.float32),
        ),
        grid_spec=pltpu.PrefetchScalarGridSpec(
            num_scalar_prefetch=0,
            grid=(N, nt),
            in_specs=[
                row_spec(cin),
                w_spec(bc, cin), w_spec(bc, 1),
                w_spec(hc, bc), w_spec(hc, 1),
                w_spec(nc, hc), w_spec(nc, 1),
                w_spec(hc, hc), w_spec(hc, 1),
            ],
            out_specs=(row_spec(bc), row_spec(hc), row_spec(nc),
                       stat_spec, stat_spec),
        ),
        compiler_params=pltpu.CompilerParams(
            # stats accumulate over the tile axis -> "arbitrary"; megacore
            # sharding happens over the (independent) image axis.
            dimension_semantics=("parallel", "arbitrary"),
            vmem_limit_bytes=_VMEM_LIMIT),
    )(x_rows,
      _bf16(params["body_w"]), params["body_b"].reshape(bc, 1),
      _bf16(params["head_w"]), params["head_b"].reshape(hc, 1),
      _bf16(params["cls_w"]), params["cls_b"].reshape(nc, 1),
      _bf16(params["proj_w1"]), params["proj_b1"].reshape(hc, 1))


# ----------------------------------------------------------------------------
# Kernel 2: ProjectionHead apply pass.
#   per tile: conv1 -> BN (precombined scale/shift) -> ReLU -> conv2 ->
#             L2 normalize along channels (sublane reduction + rsqrt).
# ----------------------------------------------------------------------------
def _proj_apply_kernel(out_ref, w1_ref, b1_ref, scale_ref, shift_ref,
                       w2_ref, b2_ref, emb_ref):
    out_bf = out_ref[0]                                       # (hc, tm) bf16
    h1 = (jnp.dot(w1_ref[...], out_bf, preferred_element_type=jnp.float32)
          + b1_ref[...])
    hn = jnp.maximum(h1 * scale_ref[...] + shift_ref[...], 0.0)
    e = (jnp.dot(w2_ref[...], hn.astype(jnp.bfloat16),
                 preferred_element_type=jnp.float32) + b2_ref[...])
    # F.normalize(p=2, dim=channels), eps=1e-12  ==  x * rsqrt(max(ss, 1e-24))
    inv = jax.lax.rsqrt(
        jnp.maximum(jnp.sum(e * e, axis=0, keepdims=True), 1e-24))
    emb_ref[0] = (e * inv).astype(emb_ref.dtype)


def proj_head_apply(out_rows, ssum, ssq, params, *, tm, valid_count):
    N, hc, S_pad = out_rows.shape
    nt = S_pad // tm

    # combine per-image partial sums -> global BN batch statistics (tiny)
    inv_n = 1.0 / valid_count
    mean = jnp.sum(ssum, axis=0) * inv_n                      # (hc, 1)
    var = jnp.sum(ssq, axis=0) * inv_n - mean * mean
    rstd = jax.lax.rsqrt(var + 1e-5)
    scale = params["proj_gamma"].reshape(hc, 1) * rstd
    shift = params["proj_beta"].reshape(hc, 1) - mean * scale

    row_spec = pl.BlockSpec((1, hc, tm), lambda n, i: (n, 0, i))
    col_spec = pl.BlockSpec((hc, 1), lambda n, i: (0, 0))
    mat_spec = pl.BlockSpec((hc, hc), lambda n, i: (0, 0))

    return pl.pallas_call(
        _proj_apply_kernel,
        out_shape=jax.ShapeDtypeStruct((N, hc, S_pad), jnp.bfloat16),
        grid_spec=pltpu.PrefetchScalarGridSpec(
            num_scalar_prefetch=0,
            grid=(N, nt),
            in_specs=[row_spec, mat_spec, col_spec, col_spec, col_spec,
                      mat_spec, col_spec],
            out_specs=row_spec),
        compiler_params=pltpu.CompilerParams(
            dimension_semantics=("parallel", "parallel"),
            vmem_limit_bytes=_VMEM_LIMIT),
    )(out_rows, _bf16(params["proj_w1"]), params["proj_b1"].reshape(hc, 1),
      scale, shift, _bf16(params["proj_w2"]), params["proj_b2"].reshape(hc, 1))


# ----------------------------------------------------------------------------
# Kernel 3: separable bilinear upsample (align_corners=False), classes batched.
# Per image: one (nc*hs, ws) @ (ws, W) W-expansion for all classes, then a
# static per-class (H, hs) @ (hs, W) H-expansion with rh resident in VMEM.
# Output is produced directly in NCHW with W (large) on lanes.
# ----------------------------------------------------------------------------
def _upsample_kernel(lg_ref, rwt_ref, rh_ref, o_ref):
    lg = lg_ref[0].astype(jnp.bfloat16)                       # (nc, hs, ws)
    nc, hs, ws = lg.shape
    tw = jnp.dot(lg.reshape(nc * hs, ws), rwt_ref[...],
                 preferred_element_type=jnp.float32)          # (nc*hs, W)
    tw = tw.reshape(nc, hs, tw.shape[-1]).astype(jnp.bfloat16)
    for c in range(nc):                                       # static unroll
        o_ref[0, c] = jnp.dot(rh_ref[...], tw[c],
                              preferred_element_type=jnp.float32)


def bilinear_upsample(logits_cf, rh, rwt):
    # logits_cf: (N, n_cls, hs, ws); rh: (H, hs); rwt: (ws, W)
    N, nc, hs, ws = logits_cf.shape
    H, W = rh.shape[0], rwt.shape[1]
    # TODO(synk): tile the H axis (grid=(N, H//th)) for large output images so
    # the (1, nc, H, W) output block stays within VMEM.
    return pl.pallas_call(
        _upsample_kernel,
        out_shape=jax.ShapeDtypeStruct((N, nc, H, W), jnp.float32),
        grid_spec=pltpu.PrefetchScalarGridSpec(
            num_scalar_prefetch=0,
            grid=(N,),
            in_specs=[
                pl.BlockSpec((1, nc, hs, ws), lambda n: (n, 0, 0, 0)),
                pl.BlockSpec((ws, W), lambda n: (0, 0)),
                pl.BlockSpec((H, hs), lambda n: (0, 0)),
            ],
            out_specs=pl.BlockSpec((1, nc, H, W), lambda n: (n, 0, 0, 0))),
        compiler_params=pltpu.CompilerParams(
            dimension_semantics=("parallel",),
            vmem_limit_bytes=_VMEM_LIMIT),
    )(logits_cf, _bf16(rwt), _bf16(rh))


# ----------------------------------------------------------------------------
# Bilinear interpolation weights (PyTorch align_corners=False semantics)
# ----------------------------------------------------------------------------
def bilinear_matrix(out_size, in_size):
    scale = in_size / out_size
    i = jnp.arange(out_size, dtype=jnp.float32)
    src = (i + 0.5) * scale - 0.5
    src = jnp.maximum(src, 0.0)                      # PyTorch clamps negatives
    i0 = jnp.clip(jnp.floor(src).astype(jnp.int32), 0, in_size - 1)
    i1 = jnp.minimum(i0 + 1, in_size - 1)
    l1 = jnp.clip(src - i0.astype(jnp.float32), 0.0, 1.0)
    l0 = 1.0 - l1
    return (jax.nn.one_hot(i0, in_size, dtype=jnp.float32) * l0[:, None]
            + jax.nn.one_hot(i1, in_size, dtype=jnp.float32) * l1[:, None])


# ----------------------------------------------------------------------------
# Parameters (deterministic synthetic init; stored (cout, cin) channels-first,
# kept f32, cast to bf16 at the kernel boundary)
# ----------------------------------------------------------------------------
def init_params(key, cin, body_ch, head_ch, n_cls):
    ks = jax.random.split(key, 12)
    w = lambda k, shape, s: jax.random.normal(k, shape, jnp.float32) * s
    return dict(
        body_w=w(ks[0], (body_ch, cin), 0.2),    body_b=w(ks[1], (body_ch,), 0.1),
        head_w=w(ks[2], (head_ch, body_ch), 0.2), head_b=w(ks[3], (head_ch,), 0.1),
        cls_w=w(ks[4], (n_cls, head_ch), 0.2),    cls_b=w(ks[5], (n_cls,), 0.1),
        proj_w1=w(ks[6], (head_ch, head_ch), 0.2), proj_b1=w(ks[7], (head_ch,), 0.1),
        proj_gamma=1.0 + w(ks[8], (head_ch,), 0.1),
        proj_beta=w(ks[9], (head_ch,), 0.1),
        proj_w2=w(ks[10], (head_ch, head_ch), 0.2), proj_b2=w(ks[11], (head_ch,), 0.1),
    )


# ----------------------------------------------------------------------------
# SegmentationModule.forward (default branch; use_classifier / return_feat /
# return_body / return_embedding exercised)
# ----------------------------------------------------------------------------
def segmentation_forward(params, x_nchw, target=None, lam=None,
                         use_classifier=True, return_feat=True,
                         return_body=True, return_embedding=True,
                         tile_rows=4096):
    # TODO(synk): only_classifier / only_head shortcut branches not implemented.
    N, C, H, W = x_nchw.shape

    # --- body (synthetic, mixup-style): stride-2 subsample + 1x1 conv + ReLU,
    # built channels-first so the spatial axis stays on lanes end to end.
    xb_in = x_nchw[:, :, ::2, ::2]                            # (N, C, hs, ws)
    hs, ws = xb_in.shape[2], xb_in.shape[3]
    S = hs * ws
    tm = min(_round_up(tile_rows, 128), _round_up(S, 128))
    S_pad = _round_up(S, tm)
    x_rows = xb_in.reshape(N, C, S)
    if S_pad != S:
        x_rows = jnp.pad(x_rows, ((0, 0), (0, 0), (0, S_pad - S)))

    # --- fused body -> head -> classifier -> proj BN stats (one pallas_call)
    xb_rows, out_rows, lg_rows, ssum, ssq = fused_backbone(
        x_rows, params, tm=tm, valid_cols=S)
    y_a, y_b = target, target
    lam = 1.0 if lam is None else lam

    bc = xb_rows.shape[1]
    hc = out_rows.shape[1]
    n_cls = lg_rows.shape[1]

    out_feat = out_rows[:, :, :S].reshape(N, hc, hs, ws)      # already NCHW

    # --- bilinear upsample back to input resolution
    if use_classifier:
        lg_cf = lg_rows[:, :, :S].reshape(N, n_cls, hs, ws)   # already NCHW
        rh = bilinear_matrix(H, hs)
        rw = bilinear_matrix(W, ws)
        sem_logits = bilinear_upsample(lg_cf, rh, rw.T)
    else:
        sem_logits = out_feat.astype(jnp.float32)

    if not return_feat:
        return sem_logits

    if not return_body:
        return sem_logits, out_feat

    x_b = xb_rows[:, :, :S].reshape(N, bc, hs, ws)
    if not return_embedding:
        return sem_logits, out_feat, x_b

    emb_rows = proj_head_apply(out_rows, ssum, ssq, params, tm=tm,
                               valid_count=float(N * S))
    embedding = emb_rows[:, :, :S].reshape(N, hc, hs, ws)
    if target is not None:
        return sem_logits, out_feat, x_b, embedding, y_a, y_b, lam
    return sem_logits, out_feat, x_b, embedding


# ----------------------------------------------------------------------------
# Pure-JAX reference (same math incl. bf16 dot inputs) for correctness check
# ----------------------------------------------------------------------------
def reference_forward(params, x_nchw):
    N, C, H, W = x_nchw.shape
    x = x_nchw[:, :, ::2, ::2]
    hs, ws = x.shape[2], x.shape[3]
    rows = jnp.transpose(x, (0, 2, 3, 1)).reshape(N * hs * ws, C)

    dot = lambda a, w: jnp.dot(a.astype(jnp.bfloat16), _bf16(w).T,
                               preferred_element_type=jnp.float32)
    xb = jnp.maximum(dot(rows, params["body_w"]) + params["body_b"], 0.0)
    out = jnp.maximum(dot(xb, params["head_w"]) + params["head_b"], 0.0)
    lg = (dot(out, params["cls_w"]) + params["cls_b"]).reshape(N, hs, ws, -1)

    rh = bilinear_matrix(H, hs)
    rw = bilinear_matrix(W, ws)
    sem = jnp.einsum("yi,xj,nijc->ncyx", rh, rw, lg,
                     precision=jax.lax.Precision.HIGHEST)

    h1 = dot(out, params["proj_w1"]) + params["proj_b1"]
    mean = jnp.mean(h1, axis=0, keepdims=True)
    var = jnp.mean(h1 * h1, axis=0, keepdims=True) - mean * mean
    hn = jnp.maximum((h1 - mean) * jax.lax.rsqrt(var + 1e-5)
                     * params["proj_gamma"] + params["proj_beta"], 0.0)
    e = dot(hn, params["proj_w2"]) + params["proj_b2"]
    emb = e * jax.lax.rsqrt(
        jnp.maximum(jnp.sum(e * e, axis=-1, keepdims=True), 1e-24))

    to_nchw = lambda a: jnp.transpose(a.reshape(N, hs, ws, -1), (0, 3, 1, 2))
    return sem, to_nchw(out), to_nchw(xb), to_nchw(emb)


if __name__ == "__main__":
    N, CIN, H, W = 2, 4, 16, 16
    BODY_CH, HEAD_CH, N_CLS = 32, 32, 8

    key = jax.random.PRNGKey(0)
    kx, kp = jax.random.split(key)
    x = jax.random.normal(kx, (N, CIN, H, W), jnp.float32)
    params = init_params(kp, CIN, BODY_CH, HEAD_CH, N_CLS)

    sem_logits, out_feat, x_b, embedding = segmentation_forward(params, x)
    jax.block_until_ready((sem_logits, out_feat, x_b, embedding))

    assert sem_logits.shape == (N, N_CLS, H, W)
    assert out_feat.shape == (N, HEAD_CH, H // 2, W // 2)
    assert x_b.shape == (N, BODY_CH, H // 2, W // 2)
    assert embedding.shape == (N, HEAD_CH, H // 2, W // 2)

    ref_sem, ref_out, ref_xb, ref_emb = reference_forward(params, x)
    tol = dict(rtol=2e-2, atol=2e-2)
    assert jnp.allclose(sem_logits, ref_sem, **tol)
    assert jnp.allclose(out_feat.astype(jnp.float32), ref_out, **tol)
    assert jnp.allclose(x_b.astype(jnp.float32), ref_xb, **tol)
    assert jnp.allclose(embedding.astype(jnp.float32), ref_emb, **tol)

    print("KERNEL_OK")
</pallas_src>

<mosaic_0001>
module attributes {stable_mosaic.version = 11 : i64} {
  func.func @_fused_backbone_kernel(%arg0: i32, %arg1: i32, %arg2: memref<1x4x128xf32, #tpu.memory_space<vmem>>, %arg3: memref<32x4xbf16, #tpu.memory_space<vmem>>, %arg4: memref<32x1xf32, #tpu.memory_space<vmem>>, %arg5: memref<32x32xbf16, #tpu.memory_space<vmem>>, %arg6: memref<32x1xf32, #tpu.memory_space<vmem>>, %arg7: memref<8x32xbf16, #tpu.memory_space<vmem>>, %arg8: memref<8x1xf32, #tpu.memory_space<vmem>>, %arg9: memref<32x32xbf16, #tpu.memory_space<vmem>>, %arg10: memref<32x1xf32, #tpu.memory_space<vmem>>, %arg11: memref<1x32x128xbf16, #tpu.memory_space<vmem>>, %arg12: memref<1x32x128xbf16, #tpu.memory_space<vmem>>, %arg13: memref<1x8x128xf32, #tpu.memory_space<vmem>>, %arg14: memref<1x32x1xf32, #tpu.memory_space<vmem>>, %arg15: memref<1x32x1xf32, #tpu.memory_space<vmem>>) attributes {dimension_semantics = [#tpu.dimension_semantics<parallel>, #tpu.dimension_semantics<arbitrary>], iteration_bounds = array<i64: 2, 1>, scalar_prefetch = 0 : i64, scratch_operands = 0 : i64, tpu.core_type = #tpu.core_type<tc>, window_params = [{transform_indices = @transform_0, window_bounds = array<i64: 1, 4, 128>}, {pipeline_mode = #tpu.pipeline_mode<synchronous>, transform_indices = @transform_1, window_bounds = array<i64: 32, 4>}, {pipeline_mode = #tpu.pipeline_mode<synchronous>, transform_indices = @transform_2, window_bounds = array<i64: 32, 1>}, {pipeline_mode = #tpu.pipeline_mode<synchronous>, transform_indices = @transform_3, window_bounds = array<i64: 32, 32>}, {pipeline_mode = #tpu.pipeline_mode<synchronous>, transform_indices = @transform_4, window_bounds = array<i64: 32, 1>}, {pipeline_mode = #tpu.pipeline_mode<synchronous>, transform_indices = @transform_5, window_bounds = array<i64: 8, 32>}, {pipeline_mode = #tpu.pipeline_mode<synchronous>, transform_indices = @transform_6, window_bounds = array<i64: 8, 1>}, {pipeline_mode = #tpu.pipeline_mode<synchronous>, transform_indices = @transform_7, window_bounds = array<i64: 32, 32>}, {pipeline_mode = #tpu.pipeline_mode<synchronous>, transform_indices = @transform_8, window_bounds = array<i64: 32, 1>}, {transform_indices = @transform_9, window_bounds = array<i64: 1, 32, 128>}, {transform_indices = @transform_10, window_bounds = array<i64: 1, 32, 128>}, {transform_indices = @transform_11, window_bounds = array<i64: 1, 8, 128>}, {transform_indices = @transform_12, window_bounds = array<i64: 1, 32, 1>}, {transform_indices = @transform_13, window_bounds = array<i64: 1, 32, 1>}]} {
    %c0 = arith.constant 0 : index
    %c0_0 = arith.constant 0 : index
    %c0_1 = arith.constant 0 : index
    %0 = vector.load %arg2[%c0, %c0_0, %c0_1] : memref<1x4x128xf32, #tpu.memory_space<vmem>>, vector<1x4x128xf32>
    %1 = vector.shape_cast %0 : vector<1x4x128xf32> to vector<4x128xf32>
    %2 = arith.truncf %1 : vector<4x128xf32> to vector<4x128xbf16>
    %c0_2 = arith.constant 0 : index
    %c0_3 = arith.constant 0 : index
    %3 = vector.load %arg3[%c0_2, %c0_3] : memref<32x4xbf16, #tpu.memory_space<vmem>>, vector<32x4xbf16>
    %cst = arith.constant dense<0.000000e+00> : vector<32x128xf32>
    %4 = tpu.matmul %3, %2, %cst {dimension_numbers = #tpu.dot_dimension_numbers<[1], [0], [0], [1], [0, 0, 1, 1], [], []>} : vector<32x4xbf16>, vector<4x128xbf16>, vector<32x128xf32> -> vector<32x128xf32>
    %c0_4 = arith.constant 0 : index
    %c0_5 = arith.constant 0 : index
    %5 = vector.load %arg4[%c0_4, %c0_5] : memref<32x1xf32, #tpu.memory_space<vmem>>, vector<32x1xf32>
    %6 = vector.broadcast %5 : vector<32x1xf32> to vector<32x128xf32>
    %7 = arith.addf %4, %6 : vector<32x128xf32>
    %cst_6 = arith.constant 0.000000e+00 : f32
    %8 = vector.broadcast %cst_6 : f32 to vector<32x128xf32>
    %9 = arith.maximumf %7, %8 : vector<32x128xf32>
    %10 = arith.truncf %9 : vector<32x128xf32> to vector<32x128xbf16>
    %c0_7 = arith.constant 0 : index
    %c0_8 = arith.constant 0 : index
    %c0_9 = arith.constant 0 : index
    %11 = vector.load %arg11[%c0_7, %c0_8, %c0_9] : memref<1x32x128xbf16, #tpu.memory_space<vmem>>, vector<1x32x128xbf16>
    %12 = vector.shape_cast %11 : vector<1x32x128xbf16> to vector<32x128xbf16>
    %13 = vector.shape_cast %10 : vector<32x128xbf16> to vector<1x32x128xbf16>
    tpu.vector_store %arg11[%c0_7, %c0_8, %c0_9], %13 {strides = array<i32>} : memref<1x32x128xbf16, #tpu.memory_space<vmem>>, vector<1x32x128xbf16>,
    %14 = arith.truncf %9 : vector<32x128xf32> to vector<32x128xbf16>
    %c0_10 = arith.constant 0 : index
    %c0_11 = arith.constant 0 : index
    %15 = vector.load %arg5[%c0_10, %c0_11] : memref<32x32xbf16, #tpu.memory_space<vmem>>, vector<32x32xbf16>
    %cst_12 = arith.constant dense<0.000000e+00> : vector<32x128xf32>
    %16 = tpu.matmul %15, %14, %cst_12 {dimension_numbers = #tpu.dot_dimension_numbers<[1], [0], [0], [1], [0, 0, 1, 1], [], []>} : vector<32x32xbf16>, vector<32x128xbf16>, vector<32x128xf32> -> vector<32x128xf32>
    %c0_13 = arith.constant 0 : index
    %c0_14 = arith.constant 0 : index
    %17 = vector.load %arg6[%c0_13, %c0_14] : memref<32x1xf32, #tpu.memory_space<vmem>>, vector<32x1xf32>
    %18 = vector.broadcast %17 : vector<32x1xf32> to vector<32x128xf32>
    %19 = arith.addf %16, %18 : vector<32x128xf32>
    %cst_15 = arith.constant 0.000000e+00 : f32
    %20 = vector.broadcast %cst_15 : f32 to vector<32x128xf32>
    %21 = arith.maximumf %19, %20 : vector<32x128xf32>
    %22 = arith.truncf %21 : vector<32x128xf32> to vector<32x128xbf16>
    %c0_16 = arith.constant 0 : index
    %c0_17 = arith.constant 0 : index
    %c0_18 = arith.constant 0 : index
    %23 = vector.load %arg12[%c0_16, %c0_17, %c0_18] : memref<1x32x128xbf16, #tpu.memory_space<vmem>>, vector<1x32x128xbf16>
    %24 = vector.shape_cast %23 : vector<1x32x128xbf16> to vector<32x128xbf16>
    %25 = vector.shape_cast %22 : vector<32x128xbf16> to vector<1x32x128xbf16>
    tpu.vector_store %arg12[%c0_16, %c0_17, %c0_18], %25 {strides = array<i32>} : memref<1x32x128xbf16, #tpu.memory_space<vmem>>, vector<1x32x128xbf16>,
    %26 = arith.truncf %21 : vector<32x128xf32> to vector<32x128xbf16>
    %c0_19 = arith.constant 0 : index
    %c0_20 = arith.constant 0 : index
    %27 = vector.load %arg7[%c0_19, %c0_20] : memref<8x32xbf16, #tpu.memory_space<vmem>>, vector<8x32xbf16>
    %cst_21 = arith.constant dense<0.000000e+00> : vector<8x128xf32>
    %28 = tpu.matmul %27, %26, %cst_21 {dimension_numbers = #tpu.dot_dimension_numbers<[1], [0], [0], [1], [0, 0, 1, 1], [], []>} : vector<8x32xbf16>, vector<32x128xbf16>, vector<8x128xf32> -> vector<8x128xf32>
    %c0_22 = arith.constant 0 : index
    %c0_23 = arith.constant 0 : index
    %29 = vector.load %arg8[%c0_22, %c0_23] : memref<8x1xf32, #tpu.memory_space<vmem>>, vector<8x1xf32>
    %30 = vector.broadcast %29 : vector<8x1xf32> to vector<8x128xf32>
    %31 = arith.addf %28, %30 : vector<8x128xf32>
    %c0_24 = arith.constant 0 : index
    %c0_25 = arith.constant 0 : index
    %c0_26 = arith.constant 0 : index
    %32 = vector.load %arg13[%c0_24, %c0_25, %c0_26] : memref<1x8x128xf32, #tpu.memory_space<vmem>>, vector<1x8x128xf32>
    %33 = vector.shape_cast %32 : vector<1x8x128xf32> to vector<8x128xf32>
    %34 = vector.shape_cast %31 : vector<8x128xf32> to vector<1x8x128xf32>
    tpu.vector_store %arg13[%c0_24, %c0_25, %c0_26], %34 {strides = array<i32>} : memref<1x8x128xf32, #tpu.memory_space<vmem>>, vector<1x8x128xf32>,
    %c0_27 = arith.constant 0 : index
    %c0_28 = arith.constant 0 : index
    %35 = vector.load %arg9[%c0_27, %c0_28] : memref<32x32xbf16, #tpu.memory_space<vmem>>, vector<32x32xbf16>
    %cst_29 = arith.constant dense<0.000000e+00> : vector<32x128xf32>
    %36 = tpu.matmul %35, %26, %cst_29 {dimension_numbers = #tpu.dot_dimension_numbers<[1], [0], [0], [1], [0, 0, 1, 1], [], []>} : vector<32x32xbf16>, vector<32x128xbf16>, vector<32x128xf32> -> vector<32x128xf32>
    %c0_30 = arith.constant 0 : index
    %c0_31 = arith.constant 0 : index
    %37 = vector.load %arg10[%c0_30, %c0_31] : memref<32x1xf32, #tpu.memory_space<vmem>>, vector<32x1xf32>
    %38 = vector.broadcast %37 : vector<32x1xf32> to vector<32x128xf32>
    %39 = arith.addf %36, %38 : vector<32x128xf32>
    %40 = tpu.iota {dimensions = array<i32: 1>} : vector<32x128xi32>
    %c128_i32 = arith.constant 128 : i32
    %41 = arith.muli %arg1, %c128_i32 : i32
    %42 = vector.broadcast %41 : i32 to vector<32x128xi32>
    %43 = arith.addi %40, %42 : vector<32x128xi32>
    %c64_i32 = arith.constant 64 : i32
    %44 = vector.broadcast %c64_i32 : i32 to vector<32x128xi32>
    %45 = arith.cmpi slt, %43, %44 : vector<32x128xi32>
    %cst_32 = arith.constant 0.000000e+00 : f32
    %46 = vector.broadcast %cst_32 : f32 to vector<32x128xf32>
    %47 = arith.select %45, %39, %46 : vector<32x128xi1>, vector<32x128xf32>
    %c0_i32 = arith.constant 0 : i32
    %48 = arith.cmpi eq, %arg1, %c0_i32 : i32
    %49 = arith.extui %48 : i1 to i32
    %c0_i32_33 = arith.constant 0 : i32
    %50 = arith.cmpi ne, %49, %c0_i32_33 : i32
    scf.if %50 {
      %cst_48 = arith.constant 0.000000e+00 : f32
      %68 = vector.broadcast %cst_48 : f32 to vector<1x32x1xf32>
      %c0_49 = arith.constant 0 : index
      %c0_50 = arith.constant 0 : index
      %c0_51 = arith.constant 0 : index
      %69 = vector.load %arg14[%c0_49, %c0_50, %c0_51] : memref<1x32x1xf32, #tpu.memory_space<vmem>>, vector<1x32x1xf32>
      tpu.vector_store %arg14[%c0_49, %c0_50, %c0_51], %68 {strides = array<i32>} : memref<1x32x1xf32, #tpu.memory_space<vmem>>, vector<1x32x1xf32>,
      %cst_52 = arith.constant 0.000000e+00 : f32
      %70 = vector.broadcast %cst_52 : f32 to vector<1x32x1xf32>
      %c0_53 = arith.constant 0 : index
      %c0_54 = arith.constant 0 : index
      %c0_55 = arith.constant 0 : index
      %71 = vector.load %arg15[%c0_53, %c0_54, %c0_55] : memref<1x32x1xf32, #tpu.memory_space<vmem>>, vector<1x32x1xf32>
      tpu.vector_store %arg15[%c0_53, %c0_54, %c0_55], %70 {strides = array<i32>} : memref<1x32x1xf32, #tpu.memory_space<vmem>>, vector<1x32x1xf32>,
    } else {
    }
    %c0_34 = arith.constant 0 : index
    %c0_35 = arith.constant 0 : index
    %c0_36 = arith.constant 0 : index
    %51 = vector.load %arg14[%c0_34, %c0_35, %c0_36] : memref<1x32x1xf32, #tpu.memory_space<vmem>>, vector<1x32x1xf32>
    %52 = vector.shape_cast %51 : vector<1x32x1xf32> to vector<32x1xf32>
    %cst_37 = arith.constant dense<0.000000e+00> : vector<32xf32>
    %53 = vector.multi_reduction <add>, %47, %cst_37 [1] : vector<32x128xf32> to vector<32xf32>
    %54 = vector.shape_cast %53 : vector<32xf32> to vector<32x1xf32>
    %55 = arith.addf %52, %54 : vector<32x1xf32>
    %c0_38 = arith.constant 0 : index
    %c0_39 = arith.constant 0 : index
    %c0_40 = arith.constant 0 : index
    %56 = vector.load %arg14[%c0_38, %c0_39, %c0_40] : memref<1x32x1xf32, #tpu.memory_space<vmem>>, vector<1x32x1xf32>
    %57 = vector.shape_cast %56 : vector<1x32x1xf32> to vector<32x1xf32>
    %58 = vector.shape_cast %55 : vector<32x1xf32> to vector<1x32x1xf32>
    tpu.vector_store %arg14[%c0_38, %c0_39, %c0_40], %58 {strides = array<i32>} : memref<1x32x1xf32, #tpu.memory_space<vmem>>, vector<1x32x1xf32>,
    %c0_41 = arith.constant 0 : index
    %c0_42 = arith.constant 0 : index
    %c0_43 = arith.constant 0 : index
    %59 = vector.load %arg15[%c0_41, %c0_42, %c0_43] : memref<1x32x1xf32, #tpu.memory_space<vmem>>, vector<1x32x1xf32>
    %60 = vector.shape_cast %59 : vector<1x32x1xf32> to vector<32x1xf32>
    %61 = arith.mulf %47, %47 : vector<32x128xf32>
    %cst_44 = arith.constant dense<0.000000e+00> : vector<32xf32>
    %62 = vector.multi_reduction <add>, %61, %cst_44 [1] : vector<32x128xf32> to vector<32xf32>
    %63 = vector.shape_cast %62 : vector<32xf32> to vector<32x1xf32>
    %64 = arith.addf %60, %63 : vector<32x1xf32>
    %c0_45 = arith.constant 0 : index
    %c0_46 = arith.constant 0 : index
    %c0_47 = arith.constant 0 : index
    %65 = vector.load %arg15[%c0_45, %c0_46, %c0_47] : memref<1x32x1xf32, #tpu.memory_space<vmem>>, vector<1x32x1xf32>
    %66 = vector.shape_cast %65 : vector<1x32x1xf32> to vector<32x1xf32>
    %67 = vector.shape_cast %64 : vector<32x1xf32> to vector<1x32x1xf32>
    tpu.vector_store %arg15[%c0_45, %c0_46, %c0_47], %67 {strides = array<i32>} : memref<1x32x1xf32, #tpu.memory_space<vmem>>, vector<1x32x1xf32>,
    return
  }
  func.func @transform_0(%arg0: i32, %arg1: i32) -> (i32, i32, i32) {
    %c0_i32 = arith.constant 0 : i32
    %c0_i32_0 = arith.constant 0 : i32
    return %arg0, %c0_i32, %arg1 : i32, i32, i32
  }
  func.func @transform_1(%arg0: i32, %arg1: i32) -> (i32, i32) {
    %c0_i32 = arith.constant 0 : i32
    %c0_i32_0 = arith.constant 0 : i32
    %c0_i32_1 = arith.constant 0 : i32
    return %c0_i32, %c0_i32_0 : i32, i32
  }
  func.func @transform_2(%arg0: i32, %arg1: i32) -> (i32, i32) {
    %c0_i32 = arith.constant 0 : i32
    %c0_i32_0 = arith.constant 0 : i32
    %c0_i32_1 = arith.constant 0 : i32
    return %c0_i32, %c0_i32_0 : i32, i32
  }
  func.func @transform_3(%arg0: i32, %arg1: i32) -> (i32, i32) {
    %c0_i32 = arith.constant 0 : i32
    %c0_i32_0 = arith.constant 0 : i32
    %c0_i32_1 = arith.constant 0 : i32
    return %c0_i32, %c0_i32_0 : i32, i32
  }
  func.func @transform_4(%arg0: i32, %arg1: i32) -> (i32, i32) {
    %c0_i32 = arith.constant 0 : i32
    %c0_i32_0 = arith.constant 0 : i32
    %c0_i32_1 = arith.constant 0 : i32
    return %c0_i32, %c0_i32_0 : i32, i32
  }
  func.func @transform_5(%arg0: i32, %arg1: i32) -> (i32, i32) {
    %c0_i32 = arith.constant 0 : i32
    %c0_i32_0 = arith.constant 0 : i32
    %c0_i32_1 = arith.constant 0 : i32
    return %c0_i32, %c0_i32_0 : i32, i32
  }
  func.func @transform_6(%arg0: i32, %arg1: i32) -> (i32, i32) {
    %c0_i32 = arith.constant 0 : i32
    %c0_i32_0 = arith.constant 0 : i32
    %c0_i32_1 = arith.constant 0 : i32
    return %c0_i32, %c0_i32_0 : i32, i32
  }
  func.func @transform_7(%arg0: i32, %arg1: i32) -> (i32, i32) {
    %c0_i32 = arith.constant 0 : i32
    %c0_i32_0 = arith.constant 0 : i32
    %c0_i32_1 = arith.constant 0 : i32
    return %c0_i32, %c0_i32_0 : i32, i32
  }
  func.func @transform_8(%arg0: i32, %arg1: i32) -> (i32, i32) {
    %c0_i32 = arith.constant 0 : i32
    %c0_i32_0 = arith.constant 0 : i32
    %c0_i32_1 = arith.constant 0 : i32
    return %c0_i32, %c0_i32_0 : i32, i32
  }
  func.func @transform_9(%arg0: i32, %arg1: i32) -> (i32, i32, i32) {
    %c0_i32 = arith.constant 0 : i32
    %c0_i32_0 = arith.constant 0 : i32
    return %arg0, %c0_i32, %arg1 : i32, i32, i32
  }
  func.func @transform_10(%arg0: i32, %arg1: i32) -> (i32, i32, i32) {
    %c0_i32 = arith.constant 0 : i32
    %c0_i32_0 = arith.constant 0 : i32
    return %arg0, %c0_i32, %arg1 : i32, i32, i32
  }
  func.func @transform_11(%arg0: i32, %arg1: i32) -> (i32, i32, i32) {
    %c0_i32 = arith.constant 0 : i32
    %c0_i32_0 = arith.constant 0 : i32
    return %arg0, %c0_i32, %arg1 : i32, i32, i32
  }
  func.func @transform_12(%arg0: i32, %arg1: i32) -> (i32, i32, i32) {
    %c0_i32 = arith.constant 0 : i32
    %c0_i32_0 = arith.constant 0 : i32
    %c0_i32_1 = arith.constant 0 : i32
    return %arg0, %c0_i32, %c0_i32_0 : i32, i32, i32
  }
  func.func @transform_13(%arg0: i32, %arg1: i32) -> (i32, i32, i32) {
    %c0_i32 = arith.constant 0 : i32
    %c0_i32_0 = arith.constant 0 : i32
    %c0_i32_1 = arith.constant 0 : i32
    return %arg0, %c0_i32, %c0_i32_0 : i32, i32, i32
  }
}

</mosaic_0001>

<llo_original>
// kernel: tpu_custom_call.1
$region0: #{tpu_custom_call.1}
  #allocation0 [shape = 'u32[]', space=smem, size = 0x4, offset = 0x4, fixed_abs, tag = 'smem constant byte address 0x4 - core index']
  #allocation1 [shape = 'u32[144,128]{1,0:T(1,128)}', space=vmem, size = 0x12000, scoped, tag = 'internal scratch']
  %s0 = inlined_call_operand.vmem [shape: f32[2,4,128], index: 0, kind: input, shape index: {}]
  %s1 = inlined_call_operand.vmem [shape: bf16[32,4], index: 1, kind: input, shape index: {}]
  %s2 = inlined_call_operand.vmem [shape: f32[32,1], index: 2, kind: input, shape index: {}]
  %s3 = inlined_call_operand.vmem [shape: bf16[32,32], index: 3, kind: input, shape index: {}]
  %s4 = inlined_call_operand.vmem [shape: f32[32,1], index: 4, kind: input, shape index: {}]
  %s5 = inlined_call_operand.vmem [shape: bf16[8,32], index: 5, kind: input, shape index: {}]
  %s6 = inlined_call_operand.vmem [shape: f32[8,1], index: 6, kind: input, shape index: {}]
  %s7 = inlined_call_operand.vmem [shape: bf16[32,32], index: 7, kind: input, shape index: {}]
  %s8 = inlined_call_operand.vmem [shape: f32[32,1], index: 8, kind: input, shape index: {}]
  %s9 = inlined_call_operand.hbm [shape: bf16[2,32,128], index: 9, kind: output, shape index: {0}]
  %s10 = inlined_call_operand.hbm [shape: bf16[2,32,128], index: 10, kind: output, shape index: {1}]
  %s11 = inlined_call_operand.hbm [shape: f32[2,8,128], index: 11, kind: output, shape index: {2}]
  %s12 = inlined_call_operand.vmem [shape: f32[2,32,1], index: 12, kind: output, shape index: {3}]
  %s13 = inlined_call_operand.vmem [shape: f32[2,32,1], index: 13, kind: output, shape index: {4}]
  %14 = xla_tuple %s9, %s10, %s11, %s12, %s13
  %s15 = sld [smem:[#allocation0]]
  $region105: #{tpu_custom_call.1} parent=0
    _
  %s17 = ssub.s32 1, %s15
  %s18 = scalar_select 0, %s17, %s15
  $region1: #{tpu_custom_call.1} parent=0
    #allocation2 [shape = 'u8[16384]{0}', space=vmem, size = 0x4000, scoped, tag = 'output window, operand 0']
    #allocation3 [shape = 's32[2]{0}', space=sflag, size = 0x8, scoped, tag = 'scoped memory for tpu_custom_call.1']
    #allocation4 [shape = 'u8[16384]{0}', space=vmem, size = 0x4000, scoped, tag = 'output window, operand 1']
    #allocation5 [shape = 's32[2]{0}', space=sflag, size = 0x8, scoped, tag = 'scoped memory for tpu_custom_call.1']
    #allocation6 [shape = 'u8[8192]{0}', space=vmem, size = 0x2000, scoped, tag = 'output window, operand 2']
    %19 = vsyncpa [#allocation3], 0
    %s20 = scalar_lea.sflag [#allocation3], 1
    %21 = vsyncpa %s20, 0
    %22 = vsyncpa [#allocation5], 0
    %s23 = scalar_lea.sflag [#allocation5], 1
    %24 = vsyncpa %s23, 0
    loop: start=0, step=1, limit=4
    $region2: #{tpu_custom_call.1} parent=1 // loop_pre_header
      _
    $region3: #{tpu_custom_call.1} parent=1 // loop_header
      %s26 = sphi 0, %s30
      %p27 = scmp.ge.s32.totalorder %s26, 4
      %s33 = sphi 0, %s45
      %s34 = sphi 0, %s41
      %s35 = sphi 0, %s33
      %s36 = sphi 0, %s34
      %s37 = sphi 0, %s35
      %s38 = sphi 0, %s36
      %s50 = sphi 0, %s52
      %s53 = sphi 0, %s50
      %s54 = sphi 0, %s53
      %s70 = sphi 0, %s54
      %s74 = sphi 0, %s74
      %s76 = sphi 0, %s74
      %s77 = sphi 0, %s76
      %s91 = sphi 0, %s77
      %s95 = sphi 0, %s95
      %s97 = sphi 0, %s95
      %s98 = sphi 0, %s97
      %s112 = sphi 0, %s98
      %s116 = sphi 0, %s116
      %s118 = sphi 0, %s116
      %s119 = sphi 0, %s118
      %s133 = sphi 0, %s119
      %s137 = sphi 0, %s137
      %s139 = sphi 0, %s137
      %s140 = sphi 0, %s139
      %s154 = sphi 0, %s140
      %s158 = sphi 0, %s158
      %s160 = sphi 0, %s158
      %s161 = sphi 0, %s160
      %s175 = sphi 0, %s161
      %s179 = sphi 0, %s179
      %s181 = sphi 0, %s179
      %s182 = sphi 0, %s181
      %s196 = sphi 0, %s182
      %s200 = sphi 0, %s200
      %s202 = sphi 0, %s200
      %s203 = sphi 0, %s202
      %s217 = sphi 0, %s203
      %s221 = sphi 0, %s221
      %s223 = sphi 0, %s221
      %s224 = sphi 0, %s223
      %s238 = sphi 0, %s224
      %s246 = sphi 0, %s248
      %s249 = sphi 0, %s246
      %s250 = sphi 0, %s249
      %s266 = sphi 0, %s250
      %s274 = sphi 0, %s276
      %s277 = sphi 0, %s274
      %s278 = sphi 0, %s277
      %s294 = sphi 0, %s278
      %s302 = sphi 0, %s304
      %s305 = sphi 0, %s302
      %s306 = sphi 0, %s305
      %s322 = sphi 0, %s306
      %s328 = sphi 0, %s330
      %s331 = sphi 0, %s328
      %s332 = sphi 0, %s331
      %s348 = sphi 0, %s332
      %s354 = sphi 0, %s356
      %s357 = sphi 0, %s354
      %s358 = sphi 0, %s357
      %s374 = sphi 0, %s358
    $region4: #{tpu_custom_call.1} parent=1 // loop_header_branch
      %29 = sbr.rel (%p27) target = $region8
    $region5: #{tpu_custom_call.1} parent=1 // loop_body
      %s31 = ssub.s32 %s26, 1
      %s32 = ssub.s32 %s26, 2
      %s39 = sadd.s32 1, %s34
      %p40 = scmp.ge.s32.totalorder %s39, 1
      %s41 = scalar_select %p40, 0, %s39
      %s42 = sadd.s32 1, %s33
      %s43 = scalar_select %p40, %s42, %s33
      %p44 = scmp.ge.s32.totalorder %s43, 2
      %s45 = scalar_select %p44, 0, %s43
      %s46 = ssub.s32 %s33, %s45
      %s47 = ssub.s32 %s34, %s41
      %s48 = sor.u32 %s46, %s47
      %p49 = scmp.eq.s32.totalorder %s48, 0
      %s51 = sadd.s32 %s50, 1
      %s52 = scalar_select %p49, %s50, %s51
      %p55 = pneg %p49
      %p56 = scmp.eq.s32.totalorder %s26, 1
      %p57 = por %p55, %p56
      %p58 = scmp.ne.s32.totalorder %s50, %s53
      %p59 = scmp.eq.s32.totalorder %s26, 0
      %p60 = por %p58, %p59
      %p61 = scmp.ne.s32.totalorder %s50, %s53
      %p62 = scmp.eq.s32.totalorder %s31, 1
      %p63 = por %p61, %p62
      %p64 = scmp.ne.s32.totalorder %s53, %s54
      %p65 = scmp.eq.s32.totalorder %s31, 0
      %p66 = por %p64, %p65
      %p67 = scmp.ne.s32.totalorder %s53, %s54
      %p68 = scmp.eq.s32.totalorder %s32, 1
      %p69 = por %p67, %p68
      %p71 = scmp.ne.s32.totalorder %s54, %s70
      %p72 = scmp.eq.s32.totalorder %s32, 0
      %p73 = por %p71, %p72
      %s75 = sadd.s32 %s74, 1
      %p78 = scmp.eq.s32.totalorder %s26, 1
      %p79 = scmp.ne.s32.totalorder %s74, %s76
      %p80 = scmp.eq.s32.totalorder %s26, 0
      %p81 = por %p79, %p80
      %p82 = scmp.ne.s32.totalorder %s74, %s76
      %p83 = scmp.eq.s32.totalorder %s31, 1
      %p84 = por %p82, %p83
      %p85 = scmp.ne.s32.totalorder %s76, %s77
      %p86 = scmp.eq.s32.totalorder %s31, 0
      %p87 = por %p85, %p86
      %p88 = scmp.ne.s32.totalorder %s76, %s77
      %p89 = scmp.eq.s32.totalorder %s32, 1
      %p90 = por %p88, %p89
      %p92 = scmp.ne.s32.totalorder %s77, %s91
      %p93 = scmp.eq.s32.totalorder %s32, 0
      %p94 = por %p92, %p93
      %s96 = sadd.s32 %s95, 1
      %p99 = scmp.eq.s32.totalorder %s26, 1
      %p100 = scmp.ne.s32.totalorder %s95, %s97
      %p101 = scmp.eq.s32.totalorder %s26, 0
      %p102 = por %p100, %p101
      %p103 = scmp.ne.s32.totalorder %s95, %s97
      %p104 = scmp.eq.s32.totalorder %s31, 1
      %p105 = por %p103, %p104
      %p106 = scmp.ne.s32.totalorder %s97, %s98
      %p107 = scmp.eq.s32.totalorder %s31, 0
      %p108 = por %p106, %p107
      %p109 = scmp.ne.s32.totalorder %s97, %s98
      %p110 = scmp.eq.s32.totalorder %s32, 1
      %p111 = por %p109, %p110
      %p113 = scmp.ne.s32.totalorder %s98, %s112
      %p114 = scmp.eq.s32.totalorder %s32, 0
      %p115 = por %p113, %p114
      %s117 = sadd.s32 %s116, 1
      %p120 = scmp.eq.s32.totalorder %s26, 1
      %p121 = scmp.ne.s32.totalorder %s116, %s118
      %p122 = scmp.eq.s32.totalorder %s26, 0
      %p123 = por %p121, %p122
      %p124 = scmp.ne.s32.totalorder %s116, %s118
      %p125 = scmp.eq.s32.totalorder %s31, 1
      %p126 = por %p124, %p125
      %p127 = scmp.ne.s32.totalorder %s118, %s119
      %p128 = scmp.eq.s32.totalorder %s31, 0
      %p129 = por %p127, %p128
      %p130 = scmp.ne.s32.totalorder %s118, %s119
      %p131 = scmp.eq.s32.totalorder %s32, 1
      %p132 = por %p130, %p131
      %p134 = scmp.ne.s32.totalorder %s119, %s133
      %p135 = scmp.eq.s32.totalorder %s32, 0
      %p136 = por %p134, %p135
      %s138 = sadd.s32 %s137, 1
      %p141 = scmp.eq.s32.totalorder %s26, 1
      %p142 = scmp.ne.s32.totalorder %s137, %s139
      %p143 = scmp.eq.s32.totalorder %s26, 0
      %p144 = por %p142, %p143
      %p145 = scmp.ne.s32.totalorder %s137, %s139
      %p146 = scmp.eq.s32.totalorder %s31, 1
      %p147 = por %p145, %p146
      %p148 = scmp.ne.s32.totalorder %s139, %s140
      %p149 = scmp.eq.s32.totalorder %s31, 0
      %p150 = por %p148, %p149
      %p151 = scmp.ne.s32.totalorder %s139, %s140
      %p152 = scmp.eq.s32.totalorder %s32, 1
      %p153 = por %p151, %p152
      %p155 = scmp.ne.s32.totalorder %s140, %s154
      %p156 = scmp.eq.s32.totalorder %s32, 0
      %p157 = por %p155, %p156
      %s159 = sadd.s32 %s158, 1
      %p162 = scmp.eq.s32.totalorder %s26, 1
      %p163 = scmp.ne.s32.totalorder %s158, %s160
      %p164 = scmp.eq.s32.totalorder %s26, 0
      %p165 = por %p163, %p164
      %p166 = scmp.ne.s32.totalorder %s158, %s160
      %p167 = scmp.eq.s32.totalorder %s31, 1
      %p168 = por %p166, %p167
      %p169 = scmp.ne.s32.totalorder %s160, %s161
      %p170 = scmp.eq.s32.totalorder %s31, 0
      %p171 = por %p169, %p170
      %p172 = scmp.ne.s32.totalorder %s160, %s161
      %p173 = scmp.eq.s32.totalorder %s32, 1
      %p174 = por %p172, %p173
      %p176 = scmp.ne.s32.totalorder %s161, %s175
      %p177 = scmp.eq.s32.totalorder %s32, 0
      %p178 = por %p176, %p177
      %s180 = sadd.s32 %s179, 1
      %p183 = scmp.eq.s32.totalorder %s26, 1
      %p184 = scmp.ne.s32.totalorder %s179, %s181
      %p185 = scmp.eq.s32.totalorder %s26, 0
      %p186 = por %p184, %p185
      %p187 = scmp.ne.s32.totalorder %s179, %s181
      %p188 = scmp.eq.s32.totalorder %s31, 1
      %p189 = por %p187, %p188
      %p190 = scmp.ne.s32.totalorder %s181, %s182
      %p191 = scmp.eq.s32.totalorder %s31, 0
      %p192 = por %p190, %p191
      %p193 = scmp.ne.s32.totalorder %s181, %s182
      %p194 = scmp.eq.s32.totalorder %s32, 1
      %p195 = por %p193, %p194
      %p197 = scmp.ne.s32.totalorder %s182, %s196
      %p198 = scmp.eq.s32.totalorder %s32, 0
      %p199 = por %p197, %p198
      %s201 = sadd.s32 %s200, 1
      %p204 = scmp.eq.s32.totalorder %s26, 1
      %p205 = scmp.ne.s32.totalorder %s200, %s202
      %p206 = scmp.eq.s32.totalorder %s26, 0
      %p207 = por %p205, %p206
      %p208 = scmp.ne.s32.totalorder %s200, %s202
      %p209 = scmp.eq.s32.totalorder %s31, 1
      %p210 = por %p208, %p209
      %p211 = scmp.ne.s32.totalorder %s202, %s203
      %p212 = scmp.eq.s32.totalorder %s31, 0
      %p213 = por %p211, %p212
      %p214 = scmp.ne.s32.totalorder %s202, %s203
      %p215 = scmp.eq.s32.totalorder %s32, 1
      %p216 = por %p214, %p215
      %p218 = scmp.ne.s32.totalorder %s203, %s217
      %p219 = scmp.eq.s32.totalorder %s32, 0
      %p220 = por %p218, %p219
      %s222 = sadd.s32 %s221, 1
      %p225 = scmp.eq.s32.totalorder %s26, 1
      %p226 = scmp.ne.s32.totalorder %s221, %s223
      %p227 = scmp.eq.s32.totalorder %s26, 0
      %p228 = por %p226, %p227
      %p229 = scmp.ne.s32.totalorder %s221, %s223
      %p230 = scmp.eq.s32.totalorder %s31, 1
      %p231 = por %p229, %p230
      %p232 = scmp.ne.s32.totalorder %s223, %s224
      %p233 = scmp.eq.s32.totalorder %s31, 0
      %p234 = por %p232, %p233
      %p235 = scmp.ne.s32.totalorder %s223, %s224
      %p236 = scmp.eq.s32.totalorder %s32, 1
      %p237 = por %p235, %p236
      %p239 = scmp.ne.s32.totalorder %s224, %s238
      %p240 = scmp.eq.s32.totalorder %s32, 0
      %p241 = por %p239, %p240
      %s242 = ssub.s32 %s33, %s45
      %s243 = ssub.s32 %s34, %s41
      %s244 = sor.u32 %s242, %s243
      %p245 = scmp.eq.s32.totalorder %s244, 0
      %s247 = sadd.s32 %s246, 1
      %s248 = scalar_select %p245, %s246, %s247
      %p251 = pneg %p245
      %p252 = scmp.eq.s32.totalorder %s26, 1
      %p253 = por %p251, %p252
      %p254 = scmp.ne.s32.totalorder %s246, %s249
      %p255 = scmp.eq.s32.totalorder %s26, 0
      %p256 = por %p254, %p255
      %p257 = scmp.ne.s32.totalorder %s246, %s249
      %p258 = scmp.eq.s32.totalorder %s31, 1
      %p259 = por %p257, %p258
      %p260 = scmp.ne.s32.totalorder %s249, %s250
      %p261 = scmp.eq.s32.totalorder %s31, 0
      %p262 = por %p260, %p261
      %p263 = scmp.ne.s32.totalorder %s249, %s250
      %p264 = scmp.eq.s32.totalorder %s32, 1
      %p265 = por %p263, %p264
      %p267 = scmp.ne.s32.totalorder %s250, %s266
      %p268 = scmp.eq.s32.totalorder %s32, 0
      %p269 = por %p267, %p268
      %s270 = ssub.s32 %s33, %s45
      %s271 = ssub.s32 %s34, %s41
      %s272 = sor.u32 %s270, %s271
      %p273 = scmp.eq.s32.totalorder %s272, 0
      %s275 = sadd.s32 %s274, 1
      %s276 = scalar_select %p273, %s274, %s275
      %p279 = pneg %p273
      %p280 = scmp.eq.s32.totalorder %s26, 1
      %p281 = por %p279, %p280
      %p282 = scmp.ne.s32.totalorder %s274, %s277
      %p283 = scmp.eq.s32.totalorder %s26, 0
      %p284 = por %p282, %p283
      %p285 = scmp.ne.s32.totalorder %s274, %s277
      %p286 = scmp.eq.s32.totalorder %s31, 1
      %p287 = por %p285, %p286
      %p288 = scmp.ne.s32.totalorder %s277, %s278
      %p289 = scmp.eq.s32.totalorder %s31, 0
      %p290 = por %p288, %p289
      %p291 = scmp.ne.s32.totalorder %s277, %s278
      %p292 = scmp.eq.s32.totalorder %s32, 1
      %p293 = por %p291, %p292
      %p295 = scmp.ne.s32.totalorder %s278, %s294
      %p296 = scmp.eq.s32.totalorder %s32, 0
      %p297 = por %p295, %p296
      %s298 = ssub.s32 %s33, %s45
      %s299 = ssub.s32 %s34, %s41
      %s300 = sor.u32 %s298, %s299
      %p301 = scmp.eq.s32.totalorder %s300, 0
      %s303 = sadd.s32 %s302, 1
      %s304 = scalar_select %p301, %s302, %s303
      %p307 = pneg %p301
      %p308 = scmp.eq.s32.totalorder %s26, 1
      %p309 = por %p307, %p308
      %p310 = scmp.ne.s32.totalorder %s302, %s305
      %p311 = scmp.eq.s32.totalorder %s26, 0
      %p312 = por %p310, %p311
      %p313 = scmp.ne.s32.totalorder %s302, %s305
      %p314 = scmp.eq.s32.totalorder %s31, 1
      %p315 = por %p313, %p314
      %p316 = scmp.ne.s32.totalorder %s305, %s306
      %p317 = scmp.eq.s32.totalorder %s31, 0
      %p318 = por %p316, %p317
      %p319 = scmp.ne.s32.totalorder %s305, %s306
      %p320 = scmp.eq.s32.totalorder %s32, 1
      %p321 = por %p319, %p320
      %p323 = scmp.ne.s32.totalorder %s306, %s322
      %p324 = scmp.eq.s32.totalorder %s32, 0
      %p325 = por %p323, %p324
      %s326 = ssub.s32 %s33, %s45
      %p327 = scmp.eq.s32.totalorder %s326, 0
      %s329 = sadd.s32 %s328, 1
      %s330 = scalar_select %p327, %s328, %s329
      %p333 = pneg %p327
      %p334 = scmp.eq.s32.totalorder %s26, 1
      %p335 = por %p333, %p334
      %p336 = scmp.ne.s32.totalorder %s328, %s331
      %p337 = scmp.eq.s32.totalorder %s26, 0
      %p338 = por %p336, %p337
      %p339 = scmp.ne.s32.totalorder %s328, %s331
      %p340 = scmp.eq.s32.totalorder %s31, 1
      %p341 = por %p339, %p340
      %p342 = scmp.ne.s32.totalorder %s331, %s332
      %p343 = scmp.eq.s32.totalorder %s31, 0
      %p344 = por %p342, %p343
      %p345 = scmp.ne.s32.totalorder %s331, %s332
      %p346 = scmp.eq.s32.totalorder %s32, 1
      %p347 = por %p345, %p346
      %p349 = scmp.ne.s32.totalorder %s332, %s348
      %p350 = scmp.eq.s32.totalorder %s32, 0
      %p351 = por %p349, %p350
      %s352 = ssub.s32 %s33, %s45
      %p353 = scmp.eq.s32.totalorder %s352, 0
      %s355 = sadd.s32 %s354, 1
      %s356 = scalar_select %p353, %s354, %s355
      %p359 = pneg %p353
      %p360 = scmp.eq.s32.totalorder %s26, 1
      %p361 = por %p359, %p360
      %p362 = scmp.ne.s32.totalorder %s354, %s357
      %p363 = scmp.eq.s32.totalorder %s26, 0
      %p364 = por %p362, %p363
      %p365 = scmp.ne.s32.totalorder %s354, %s357
      %p366 = scmp.eq.s32.totalorder %s31, 1
      %p367 = por %p365, %p366
      %p368 = scmp.ne.s32.totalorder %s357, %s358
      %p369 = scmp.eq.s32.totalorder %s31, 0
      %p370 = por %p368, %p369
      %p371 = scmp.ne.s32.totalorder %s357, %s358
      %p372 = scmp.eq.s32.totalorder %s32, 1
      %p373 = por %p371, %p372
      %p375 = scmp.ne.s32.totalorder %s358, %s374
      %p376 = scmp.eq.s32.totalorder %s32, 0
      %p377 = por %p375, %p376
      %p378 = scmp.le.s32.totalorder 1, %s26
      %p379 = scmp.lt.s32.totalorder %s26, 3
      %p380 = pnand %p378, %p379
      %p381 = pneg %p380
      // Predicated region
      $region9: #{tpu_custom_call.1} parent=5 // pred_check
        _
      $region10: #{tpu_custom_call.1} parent=5 // pred_check_branch
        %383 = sbr.rel (%p380) target = $region12
      $region11: #{tpu_custom_call.1} parent=5 // pred_region
        %s384 = ssub.s32 %s26, 1
        // Predicated region
        $region13: #{tpu_custom_call.1} parent=11 // pred_check
          %p385 = pneg %p87
        $region14: #{tpu_custom_call.1} parent=11 // pred_check_branch
          %387 = sbr.rel (%p385) target = $region16
        $region15: #{tpu_custom_call.1} parent=11 // pred_region
          _
        $region16: #{tpu_custom_call.1} parent=11 // pred_fallthru
          _
        // Predicated region
        $region17: #{tpu_custom_call.1} parent=11 // pred_check
          %p388 = pneg %p108
        $region18: #{tpu_custom_call.1} parent=11 // pred_check_branch
          %390 = sbr.rel (%p388) target = $region20
        $region19: #{tpu_custom_call.1} parent=11 // pred_region
          _
        $region20: #{tpu_custom_call.1} parent=11 // pred_fallthru
          _
        // Predicated region
        $region21: #{tpu_custom_call.1} parent=11 // pred_check
          %p391 = pneg %p129
        $region22: #{tpu_custom_call.1} parent=11 // pred_check_branch
          %393 = sbr.rel (%p391) target = $region24
        $region23: #{tpu_custom_call.1} parent=11 // pred_region
          _
        $region24: #{tpu_custom_call.1} parent=11 // pred_fallthru
          _
        // Predicated region
        $region25: #{tpu_custom_call.1} parent=11 // pred_check
          %p394 = pneg %p150
        $region26: #{tpu_custom_call.1} parent=11 // pred_check_branch
          %396 = sbr.rel (%p394) target = $region28
        $region27: #{tpu_custom_call.1} parent=11 // pred_region
          _
        $region28: #{tpu_custom_call.1} parent=11 // pred_fallthru
          _
        // Predicated region
        $region29: #{tpu_custom_call.1} parent=11 // pred_check
          %p397 = pneg %p171
        $region30: #{tpu_custom_call.1} parent=11 // pred_check_branch
          %399 = sbr.rel (%p397) target = $region32
        $region31: #{tpu_custom_call.1} parent=11 // pred_region
          _
        $region32: #{tpu_custom_call.1} parent=11 // pred_fallthru
          _
        // Predicated region
        $region33: #{tpu_custom_call.1} parent=11 // pred_check
          %p400 = pneg %p192
        $region34: #{tpu_custom_call.1} parent=11 // pred_check_branch
          %402 = sbr.rel (%p400) target = $region36
        $region35: #{tpu_custom_call.1} parent=11 // pred_region
          _
        $region36: #{tpu_custom_call.1} parent=11 // pred_fallthru
          _
        // Predicated region
        $region37: #{tpu_custom_call.1} parent=11 // pred_check
          %p403 = pneg %p213
        $region38: #{tpu_custom_call.1} parent=11 // pred_check_branch
          %405 = sbr.rel (%p403) target = $region40
        $region39: #{tpu_custom_call.1} parent=11 // pred_region
          _
        $region40: #{tpu_custom_call.1} parent=11 // pred_fallthru
          _
        // Predicated region
        $region41: #{tpu_custom_call.1} parent=11 // pred_check
          %p406 = pneg %p234
        $region42: #{tpu_custom_call.1} parent=11 // pred_check_branch
          %408 = sbr.rel (%p406) target = $region44
        $region43: #{tpu_custom_call.1} parent=11 // pred_region
          _
        $region44: #{tpu_custom_call.1} parent=11 // pred_fallthru
          _
      $region12: #{tpu_custom_call.1} parent=5 // pred_fallthru
        _
      %p409 = scmp.lt.s32.totalorder %s26, 2
      // Predicated region
      $region45: #{tpu_custom_call.1} parent=5 // pred_check
        %p410 = pneg %p409
      $region46: #{tpu_custom_call.1} parent=5 // pred_check_branch
        %412 = sbr.rel (%p410) target = $region48
      $region47: #{tpu_custom_call.1} parent=5 // pred_region
        // Predicated region
        $region49: #{tpu_custom_call.1} parent=47 // pred_check
          %p413 = pneg %p60
        $region50: #{tpu_custom_call.1} parent=47 // pred_check_branch
          %415 = sbr.rel (%p413) target = $region52
        $region51: #{tpu_custom_call.1} parent=47 // pred_region
          %p416 = scmp.lt.s32.totalorder %s33, 1
          %s417 = scalar_select %p416, %s33, 1
          %p418 = scmp.lt.s32.totalorder %s34, 0
          %s419 = scalar_select %p418, %s34, 0
          %s420 = sadd.s32 %s419, %s417
          %s421 = smul.addr %s420, 4
          %s422 = scalar_lea.vmem %s0, %s421
        $region52: #{tpu_custom_call.1} parent=47 // pred_fallthru
          _
      $region48: #{tpu_custom_call.1} parent=5 // pred_fallthru
        _
      %p423 = scmp.le.s32.totalorder 1, %s26
      %p424 = scmp.lt.s32.totalorder %s26, 3
      %p425 = pnand %p423, %p424
      %p426 = pneg %p425
      // Predicated region
      $region53: #{tpu_custom_call.1} parent=5 // pred_check
        _
      $region54: #{tpu_custom_call.1} parent=5 // pred_check_branch
        %428 = sbr.rel (%p425) target = $region56
      $region55: #{tpu_custom_call.1} parent=5 // pred_region
        %s429 = ssub.s32 %s26, 1
        %p430 = scmp.lt.s32.totalorder %s35, 1
        %s431 = scalar_select %p430, %s35, 1
        %p432 = scmp.lt.s32.totalorder %s36, 0
        %s433 = scalar_select %p432, %s36, 0
        %s434 = sadd.s32 %s433, %s431
        %s435 = smul.addr %s434, 4
        %s436 = scalar_lea.vmem %s0, %s435
        %p437 = pneg %p66
        %p438 = pneg %p63
        %p439 = pneg %p87
        %p440 = pneg %p84
        %p441 = pneg %p108
        %p442 = pneg %p105
        %p443 = pneg %p129
        %p444 = pneg %p126
        %p445 = pneg %p150
        %p446 = pneg %p147
        %p447 = pneg %p171
        %p448 = pneg %p168
        %p449 = pneg %p192
        %p450 = pneg %p189
        %p451 = pneg %p213
        %p452 = pneg %p210
        %p453 = pneg %p234
        %p454 = pneg %p231
        %p455 = pneg %p262
        %p456 = pneg %p259
        %s457 = sand.u32 %s249, 1
        %s458 = scalar_lea.sflag [#allocation3], %s457
        %s459 = sand.u32 %s249, 1
        %s460 = smul.addr %s459, 16
        %s461 = scalar_lea.vmem [#allocation2], %s460
        %p462 = pneg %p290
        %p463 = pneg %p287
        %s464 = sand.u32 %s31, 1
        %s465 = scalar_lea.sflag [#allocation5], %s464
        %s466 = sand.u32 %s277, 1
        %s467 = smul.addr %s466, 16
        %s468 = scalar_lea.vmem [#allocation4], %s467
        %p469 = pneg %p318
        %p470 = pneg %p315
        %s471 = sand.u32 %s31, 1
        %s472 = scalar_lea.sflag [#allocation5], %s471
        %s473 = sand.u32 %s305, 1
        %s474 = smul.addr %s473, 8
        %s475 = scalar_lea.vmem [#allocation6], %s474
        %p476 = pneg %p344
        %p477 = pneg %p341
        %p478 = scmp.lt.s32.totalorder %s35, 1
        %s479 = scalar_select %p478, %s35, 1
        %s480 = smul.addr %s479, 4
        %s481 = smul.addr %s480, 8
        %s482 = scalar_lea.vmem %s12, %s481
        %p483 = pneg %p370
        %p484 = pneg %p367
        %p485 = scmp.lt.s32.totalorder %s35, 1
        %s486 = scalar_select %p485, %s35, 1
        %s487 = smul.addr %s486, 4
        %s488 = smul.addr %s487, 8
        %s489 = scalar_lea.vmem %s13, %s488
        %p490 = scmp.lt.s32.totalorder %s35, 1
        %s491 = scalar_select %p490, %s35, 1
        %p492 = scmp.lt.s32.totalorder %s36, 0
        %s493 = scalar_select %p492, %s36, 0
        %s494 = sadd.s32 %s493, %s491
        %s495 = smul.addr %s494, 4
        %s496 = scalar_lea.vmem %s0, %s495
        %p497 = scmp.lt.s32.totalorder %s35, 1
        %s498 = scalar_select %p497, %s35, 1
        %s499 = smul.addr %s498, 4
        %s500 = smul.addr %s499, 8
        %s501 = scalar_lea.vmem %s12, %s500
        %p502 = scmp.lt.s32.totalorder %s35, 1
        %s503 = scalar_select %p502, %s35, 1
        %s504 = smul.addr %s503, 4
        %s505 = smul.addr %s504, 8
        %s506 = scalar_lea.vmem %s13, %s505
        %v508 = vld [vmem:[%s496] sm:$0xf]
        %v509 = vpack.c.bf16 %v508, %v508
        %v510 = vld [vmem:[%s1] sm:$0xf]
        %v511 = vld [vmem:[%s1 + $0x4] sm:$0xf]
        %v512 = vld [vmem:[%s1 + $0x8] sm:$0xf]
        %v513 = vld [vmem:[%s1 + $0xc] sm:$0xf]
        %v514 = vld [vmem:[%s2] sm:$0xff]
        %v515 = vld [vmem:[%s2 + $0x8] sm:$0xff]
        %v516 = vld [vmem:[%s2 + $0x10] sm:$0xff]
        %v517 = vld [vmem:[%s2 + $0x18] sm:$0xff]
        %519 = vset.pattern.permute.xlu0 0
        %520 = vperm.xlu0 %519, %v514
        %v521 = vpop.permute.xlu0 %520
        %524 = vset.pattern.permute.xlu0 0
        %525 = vperm.xlu0 %524, %v515
        %v526 = vpop.permute.xlu0 %525
        %529 = vset.pattern.permute.xlu0 0
        %530 = vperm.xlu0 %529, %v516
        %v531 = vpop.permute.xlu0 %530
        %534 = vset.pattern.permute.xlu0 0
        %535 = vperm.xlu0 %534, %v517
        %v536 = vpop.permute.xlu0 %535
        %v542 = vunpack.c.l.b16 %v510
        %v543 = vunpack.c.l.b16 %v511
        %v544 = vunpack.c.l.b16 %v512
        %v545 = vunpack.c.l.b16 %v513
        %v546 = vpack.c.b16 %v543, %v542
        %v547 = vpack.c.b16 %v545, %v544
        %vm548 = vcmask 31744
        %v550 = vsel %vm548, %v546, 0
        %v553 = vsel %vm548, %v547, 0
        %vm555 = vcmask 1041408
        %v557 = vsel %vm555, %v509, 0
        %559 = vmatprep.subr.bf16.mxu0 0
        %560 = vmatpush1.bf16.msra.mxu0 0
        %561 = vmatprep.subr.bf16.mxu0 0
        %562 = vmatpush1.bf16.msra.mxu0 0
        %563 = vmatprep.subr.bf16.mxu0 0
        %564 = vmatpush1.bf16.msra.mxu0 0
        %565 = vmatprep.subr.bf16.mxu0 0
        %566 = vmatpush1.bf16.msra.mxu0 0
        %567 = vmatprep.subr.bf16.mxu0 0
        %568 = vmatpush1.bf16.msra.mxu0 0
        %569 = vmatprep.subr.bf16.mxu0 0
        %570 = vmatpush1.bf16.msra.mxu0 0
        %571 = vmatprep.subr.bf16.mxu0 0
        %572 = vmatpush1.bf16.msra.mxu0 0
        %573 = vmatprep.subr.bf16.mxu0 0
        %574 = vmatpush1.bf16.msra.mxu0 %v557
        %575 = vmatprep.subr.bf16.mxu0 0
        %576 = vmatpush2.bf16.msra.mxu0 0
        %577 = vmatprep.subr.bf16.mxu0 0
        %578 = vmatpush2.bf16.msra.mxu0 0
        %579 = vmatprep.subr.bf16.mxu0 0
        %580 = vmatpush2.bf16.msra.mxu0 0
        %581 = vmatprep.subr.bf16.mxu0 0
        %582 = vmatpush2.bf16.msra.mxu0 0
        %583 = vmatprep.subr.bf16.mxu0 0
        %584 = vmatpush2.bf16.msra.mxu0 0
        %585 = vmatprep.subr.bf16.mxu0 0
        %586 = vmatpush2.bf16.msra.mxu0 0
        %587 = vmatprep.subr.bf16.mxu0 0
        %588 = vmatpush2.bf16.msra.mxu0 0
        %589 = vmatprep.subr.bf16.mxu0 0
        %590 = vmatpush2.bf16.msra.mxu0 0
        %591 = vmatprep.mubr.bf16.mxu0 0
        %592 = vmatmul.mubr.bf16.gmra.mxu0 %v550
        %v593 = vpop.f32.mrf.mxu0
        %v594 = vadd.f32 %v521, %v593
        %v595 = vpop.f32.mrf.mxu0
        %v596 = vpop.f32.mrf.mxu0
        %v597 = vadd.f32 %v526, %v596
        %v598 = vpop.f32.mrf.mxu0
        %599 = vmatprep.mubr.bf16.mxu0 0
        %600 = vmatmul.mubr.bf16.gmra.mxu0 %v553
        %v601 = vpop.f32.mrf.mxu0
        %v602 = vadd.f32 %v531, %v601
        %v603 = vpop.f32.mrf.mxu0
        %v604 = vpop.f32.mrf.mxu0
        %v605 = vadd.f32 %v536, %v604
        %v606 = vpop.f32.mrf.mxu0
        %607 = vdwg.mxu0
        %v608 = vmax.f32 %v594, 0.0
        %v609 = vmax.f32 %v597, 0.0
        %v610 = vmax.f32 %v602, 0.0
        %v611 = vmax.f32 %v605, 0.0
        %v612 = vpack.c.bf16 %v609, %v608
        %v613 = vpack.c.bf16 %v611, %v610
        %v616 = vunpack.c.l.b16 %v612
        %v617 = vunpack.c.h.b16 %v612
        %v618 = vunpack.c.l.b16 %v613
        %v619 = vunpack.c.h.b16 %v613
        %v620 = vpack.c.b16 %v616, %v616
        %v621 = vpack.c.b16 %v617, %v617
        %v622 = vpack.c.b16 %v618, %v618
        %v623 = vpack.c.b16 %v619, %v619
        %628 = vst [vmem:[%s461] sm:$0xf] %v620
        %629 = vst [vmem:[%s461 + $0x4] sm:$0xf] %v621
        %630 = vst [vmem:[%s461 + $0x8] sm:$0xf] %v622
        %631 = vst [vmem:[%s461 + $0xc] sm:$0xf] %v623
        %v632 = vld [vmem:[%s3] sm:$0xf]
        %v633 = vld [vmem:[%s3 + $0x4] sm:$0xf]
        %v634 = vld [vmem:[%s3 + $0x8] sm:$0xf]
        %v635 = vld [vmem:[%s3 + $0xc] sm:$0xf]
        %v636 = vld [vmem:[%s4] sm:$0xff]
        %v637 = vld [vmem:[%s4 + $0x8] sm:$0xff]
        %v638 = vld [vmem:[%s4 + $0x10] sm:$0xff]
        %v639 = vld [vmem:[%s4 + $0x18] sm:$0xff]
        %641 = vset.pattern.permute.xlu0 0
        %642 = vperm.xlu0 %641, %v636
        %v643 = vpop.permute.xlu0 %642
        %646 = vset.pattern.permute.xlu0 0
        %647 = vperm.xlu0 %646, %v637
        %v648 = vpop.permute.xlu0 %647
        %651 = vset.pattern.permute.xlu0 0
        %652 = vperm.xlu0 %651, %v638
        %v653 = vpop.permute.xlu0 %652
        %656 = vset.pattern.permute.xlu0 0
        %657 = vperm.xlu0 %656, %v639
        %v658 = vpop.permute.xlu0 %657
        %v664 = vunpack.c.l.b16 %v632
        %v665 = vunpack.c.l.b16 %v633
        %v666 = vunpack.c.l.b16 %v634
        %v667 = vunpack.c.l.b16 %v635
        %v668 = vpack.c.b16 %v665, %v664
        %v669 = vpack.c.b16 %v667, %v666
        %vm670 = vcmask 261120
        %v672 = vsel %vm670, %v668, 0
        %v675 = vsel %vm670, %v669, 0
        %677 = vmatprep.subr.bf16.mxu0 0
        %678 = vmatpush1.bf16.msra.mxu0 0
        %679 = vmatprep.subr.bf16.mxu0 0
        %680 = vmatpush1.bf16.msra.mxu0 0
        %681 = vmatprep.subr.bf16.mxu0 0
        %682 = vmatpush1.bf16.msra.mxu0 0
        %683 = vmatprep.subr.bf16.mxu0 0
        %684 = vmatpush1.bf16.msra.mxu0 0
        %685 = vmatprep.subr.bf16.mxu0 0
        %686 = vmatpush1.bf16.msra.mxu0 0
        %687 = vmatprep.subr.bf16.mxu0 0
        %688 = vmatpush1.bf16.msra.mxu0 0
        %689 = vmatprep.subr.bf16.mxu0 0
        %690 = vmatpush1.bf16.msra.mxu0 %v613
        %691 = vmatprep.subr.bf16.mxu0 0
        %692 = vmatpush1.bf16.msra.mxu0 %v612
        %693 = vmatprep.subr.bf16.mxu0 0
        %694 = vmatpush2.bf16.msra.mxu0 0
        %695 = vmatprep.subr.bf16.mxu0 0
        %696 = vmatpush2.bf16.msra.mxu0 0
        %697 = vmatprep.subr.bf16.mxu0 0
        %698 = vmatpush2.bf16.msra.mxu0 0
        %699 = vmatprep.subr.bf16.mxu0 0
        %700 = vmatpush2.bf16.msra.mxu0 0
        %701 = vmatprep.subr.bf16.mxu0 0
        %702 = vmatpush2.bf16.msra.mxu0 0
        %703 = vmatprep.subr.bf16.mxu0 0
        %704 = vmatpush2.bf16.msra.mxu0 0
        %705 = vmatprep.subr.bf16.mxu0 0
        %706 = vmatpush2.bf16.msra.mxu0 0
        %707 = vmatprep.subr.bf16.mxu0 0
        %708 = vmatpush2.bf16.msra.mxu0 0
        %709 = vmatprep.mubr.bf16.mxu0 0
        %710 = vmatmul.mubr.bf16.gmra.mxu0 %v672
        %v711 = vpop.f32.mrf.mxu0
        %v712 = vadd.f32 %v643, %v711
        %v713 = vpop.f32.mrf.mxu0
        %v714 = vpop.f32.mrf.mxu0
        %v715 = vadd.f32 %v648, %v714
        %v716 = vpop.f32.mrf.mxu0
        %717 = vmatprep.mubr.bf16.mxu0 0
        %718 = vmatmul.mubr.bf16.gmra.mxu0 %v675
        %v719 = vpop.f32.mrf.mxu0
        %v720 = vadd.f32 %v653, %v719
        %v721 = vpop.f32.mrf.mxu0
        %v722 = vpop.f32.mrf.mxu0
        %v723 = vadd.f32 %v658, %v722
        %v724 = vpop.f32.mrf.mxu0
        %725 = vdwg.mxu0
        %v726 = vmax.f32 %v712, 0.0
        %v727 = vmax.f32 %v715, 0.0
        %v728 = vmax.f32 %v720, 0.0
        %v729 = vmax.f32 %v723, 0.0
        %v730 = vpack.c.bf16 %v727, %v726
        %v731 = vpack.c.bf16 %v729, %v728
        %v734 = vunpack.c.l.b16 %v730
        %v735 = vunpack.c.h.b16 %v730
        %v736 = vunpack.c.l.b16 %v731
        %v737 = vunpack.c.h.b16 %v731
        %v738 = vpack.c.b16 %v734, %v734
        %v739 = vpack.c.b16 %v735, %v735
        %v740 = vpack.c.b16 %v736, %v736
        %v741 = vpack.c.b16 %v737, %v737
        %746 = vst [vmem:[%s468] sm:$0xf] %v738
        %747 = vst [vmem:[%s468 + $0x4] sm:$0xf] %v739
        %748 = vst [vmem:[%s468 + $0x8] sm:$0xf] %v740
        %749 = vst [vmem:[%s468 + $0xc] sm:$0xf] %v741
        %v750 = vld [vmem:[%s5] sm:$0xf]
        %v751 = vld [vmem:[%s6] sm:$0xff]
        %753 = vset.pattern.permute.xlu0 0
        %754 = vperm.xlu0 %753, %v751
        %v755 = vpop.permute.xlu0 %754
        %v758 = vsel %vm670, %v750, 0
        %760 = vmatprep.subr.bf16.mxu0 0
        %761 = vmatpush1.bf16.msra.mxu0 0
        %762 = vmatprep.subr.bf16.mxu0 0
        %763 = vmatpush1.bf16.msra.mxu0 0
        %764 = vmatprep.subr.bf16.mxu0 0
        %765 = vmatpush1.bf16.msra.mxu0 0
        %766 = vmatprep.subr.bf16.mxu0 0
        %767 = vmatpush1.bf16.msra.mxu0 0
        %768 = vmatprep.subr.bf16.mxu0 0
        %769 = vmatpush1.bf16.msra.mxu0 0
        %770 = vmatprep.subr.bf16.mxu0 0
        %771 = vmatpush1.bf16.msra.mxu0 0
        %772 = vmatprep.subr.bf16.mxu0 0
        %773 = vmatpush1.bf16.msra.mxu0 %v731
        %774 = vmatprep.subr.bf16.mxu0 0
        %775 = vmatpush1.bf16.msra.mxu0 %v730
        %776 = vmatprep.subr.bf16.mxu0 0
        %777 = vmatpush2.bf16.msra.mxu0 0
        %778 = vmatprep.subr.bf16.mxu0 0
        %779 = vmatpush2.bf16.msra.mxu0 0
        %780 = vmatprep.subr.bf16.mxu0 0
        %781 = vmatpush2.bf16.msra.mxu0 0
        %782 = vmatprep.subr.bf16.mxu0 0
        %783 = vmatpush2.bf16.msra.mxu0 0
        %784 = vmatprep.subr.bf16.mxu0 0
        %785 = vmatpush2.bf16.msra.mxu0 0
        %786 = vmatprep.subr.bf16.mxu0 0
        %787 = vmatpush2.bf16.msra.mxu0 0
        %788 = vmatprep.subr.bf16.mxu0 0
        %789 = vmatpush2.bf16.msra.mxu0 0
        %790 = vmatprep.subr.bf16.mxu0 0
        %791 = vmatpush2.bf16.msra.mxu0 0
        %792 = vmatprep.mubr.bf16.mxu0 0
        %793 = vmatmul.mubr.bf16.gmra.mxu0 %v758
        %v794 = vpop.f32.mrf.mxu0
        %v795 = vadd.f32 %v755, %v794
        %v796 = vpop.f32.mrf.mxu0
        %v797 = vpop.f32.mrf.mxu0
        %v798 = vpop.f32.mrf.mxu0
        %799 = vdwg.mxu0
        %800 = vst [vmem:[%s475] sm:$0xff] %v795
        %v801 = vld [vmem:[%s7] sm:$0xf]
        %v802 = vld [vmem:[%s7 + $0x4] sm:$0xf]
        %v803 = vld [vmem:[%s7 + $0x8] sm:$0xf]
        %v804 = vld [vmem:[%s7 + $0xc] sm:$0xf]
        %v805 = vld [vmem:[%s8] sm:$0xff]
        %v806 = vld [vmem:[%s8 + $0x8] sm:$0xff]
        %v807 = vld [vmem:[%s8 + $0x10] sm:$0xff]
        %v808 = vld [vmem:[%s8 + $0x18] sm:$0xff]
        %810 = vset.pattern.permute.xlu0 0
        %811 = vperm.xlu0 %810, %v805
        %v812 = vpop.permute.xlu0 %811
        %815 = vset.pattern.permute.xlu0 0
        %816 = vperm.xlu0 %815, %v806
        %v817 = vpop.permute.xlu0 %816
        %820 = vset.pattern.permute.xlu0 0
        %821 = vperm.xlu0 %820, %v807
        %v822 = vpop.permute.xlu0 %821
        %825 = vset.pattern.permute.xlu0 0
        %826 = vperm.xlu0 %825, %v808
        %v827 = vpop.permute.xlu0 %826
        %v833 = vunpack.c.l.b16 %v801
        %v834 = vunpack.c.l.b16 %v802
        %v835 = vunpack.c.l.b16 %v803
        %v836 = vunpack.c.l.b16 %v804
        %v837 = vpack.c.b16 %v834, %v833
        %v838 = vpack.c.b16 %v836, %v835
        %v840 = vsel %vm670, %v837, 0
        %v843 = vsel %vm670, %v838, 0
        %845 = vmatprep.subr.bf16.mxu0 0
        %846 = vmatpush1.bf16.msra.mxu0 0
        %847 = vmatprep.subr.bf16.mxu0 0
        %848 = vmatpush1.bf16.msra.mxu0 0
        %849 = vmatprep.subr.bf16.mxu0 0
        %850 = vmatpush1.bf16.msra.mxu0 0
        %851 = vmatprep.subr.bf16.mxu0 0
        %852 = vmatpush1.bf16.msra.mxu0 0
        %853 = vmatprep.subr.bf16.mxu0 0
        %854 = vmatpush1.bf16.msra.mxu0 0
        %855 = vmatprep.subr.bf16.mxu0 0
        %856 = vmatpush1.bf16.msra.mxu0 0
        %857 = vmatprep.subr.bf16.mxu0 0
        %858 = vmatpush1.bf16.msra.mxu0 %v731
        %859 = vmatprep.subr.bf16.mxu0 0
        %860 = vmatpush1.bf16.msra.mxu0 %v730
        %861 = vmatprep.subr.bf16.mxu0 0
        %862 = vmatpush2.bf16.msra.mxu0 0
        %863 = vmatprep.subr.bf16.mxu0 0
        %864 = vmatpush2.bf16.msra.mxu0 0
        %865 = vmatprep.subr.bf16.mxu0 0
        %866 = vmatpush2.bf16.msra.mxu0 0
        %867 = vmatprep.subr.bf16.mxu0 0
        %868 = vmatpush2.bf16.msra.mxu0 0
        %869 = vmatprep.subr.bf16.mxu0 0
        %870 = vmatpush2.bf16.msra.mxu0 0
        %871 = vmatprep.subr.bf16.mxu0 0
        %872 = vmatpush2.bf16.msra.mxu0 0
        %873 = vmatprep.subr.bf16.mxu0 0
        %874 = vmatpush2.bf16.msra.mxu0 0
        %875 = vmatprep.subr.bf16.mxu0 0
        %876 = vmatpush2.bf16.msra.mxu0 0
        %877 = vmatprep.mubr.bf16.mxu0 0
        %878 = vmatmul.mubr.bf16.gmra.mxu0 %v840
        %v879 = vpop.f32.mrf.mxu0
        %v880 = vadd.f32 %v812, %v879
        %v881 = vpop.f32.mrf.mxu0
        %v882 = vpop.f32.mrf.mxu0
        %v883 = vadd.f32 %v817, %v882
        %v884 = vpop.f32.mrf.mxu0
        %885 = vmatprep.mubr.bf16.mxu0 0
        %886 = vmatmul.mubr.bf16.gmra.mxu0 %v843
        %v887 = vpop.f32.mrf.mxu0
        %v888 = vadd.f32 %v822, %v887
        %v889 = vpop.f32.mrf.mxu0
        %v890 = vpop.f32.mrf.mxu0
        %v891 = vadd.f32 %v827, %v890
        %v892 = vpop.f32.mrf.mxu0
        %893 = vdwg.mxu0
        %v894 = vlaneseq
        %v895 = vand.u32 %v894, 127
        %s896 = smul.u32 %s36, 128
        %v897 = vstv %s896
        %v898 = vadd.s32 %v895, %v897
        %vm899 = vcmp.lt.s32.totalorder %v898, 64
        %v900 = vsel %vm899, %v880, 0.0
        %v901 = vsel %vm899, %v883, 0.0
        %v902 = vsel %vm899, %v888, 0.0
        %v903 = vsel %vm899, %v891, 0.0
        %p904 = scmp.eq.s32.totalorder %s36, 0
        // Predicated region
        $region57: #{tpu_custom_call.1} parent=55 // pred_check
          %p905 = pneg %p904
        $region58: #{tpu_custom_call.1} parent=55 // pred_check_branch
          %907 = sbr.rel (%p905) target = $region60
        $region59: #{tpu_custom_call.1} parent=55 // pred_region
          %vm908 = vcmask 7168
          %909 = vst.msk [vmem:[%s501] sm:$0xff] %vm908, 0.0
          %910 = vst.msk [vmem:[%s501 + $0x8] sm:$0xff] %vm908, 0.0
          %911 = vst.msk [vmem:[%s501 + $0x10] sm:$0xff] %vm908, 0.0
          %912 = vst.msk [vmem:[%s501 + $0x18] sm:$0xff] %vm908, 0.0
          %913 = vst.msk [vmem:[%s506] sm:$0xff] %vm908, 0.0
          %914 = vst.msk [vmem:[%s506 + $0x8] sm:$0xff] %vm908, 0.0
          %915 = vst.msk [vmem:[%s506 + $0x10] sm:$0xff] %vm908, 0.0
          %916 = vst.msk [vmem:[%s506 + $0x18] sm:$0xff] %vm908, 0.0
        $region60: #{tpu_custom_call.1} parent=55 // pred_fallthru
          _
        %v917 = vld [vmem:[%s501] sm:$0xff]
        %v918 = vld [vmem:[%s501 + $0x8] sm:$0xff]
        %v919 = vld [vmem:[%s501 + $0x10] sm:$0xff]
        %v920 = vld [vmem:[%s501 + $0x18] sm:$0xff]
        %921 = vadd.xlane.f32.xlu0 %v900
        %v922 = vpop.xlane.xlu0 %921
        %923 = vadd.xlane.f32.xlu0 %v901
        %v924 = vpop.xlane.xlu0 %923
        %925 = vadd.xlane.f32.xlu0 %v902
        %v926 = vpop.xlane.xlu0 %925
        %927 = vadd.xlane.f32.xlu0 %v903
        %v928 = vpop.xlane.xlu0 %927
        %v929 = vadd.f32 %v917, %v922
        %v930 = vadd.f32 %v918, %v924
        %v931 = vadd.f32 %v919, %v926
        %v932 = vadd.f32 %v920, %v928
        %vm933 = vcmask 7168
        %934 = vst.msk [vmem:[%s501] sm:$0xff] %vm933, %v929
        %935 = vst.msk [vmem:[%s501 + $0x8] sm:$0xff] %vm933, %v930
        %936 = vst.msk [vmem:[%s501 + $0x10] sm:$0xff] %vm933, %v931
        %937 = vst.msk [vmem:[%s501 + $0x18] sm:$0xff] %vm933, %v932
        %v938 = vld [vmem:[%s506] sm:$0xff]
        %v939 = vld [vmem:[%s506 + $0x8] sm:$0xff]
        %v940 = vld [vmem:[%s506 + $0x10] sm:$0xff]
        %v941 = vld [vmem:[%s506 + $0x18] sm:$0xff]
        %v942 = vmul.f32 %v900, %v900
        %v943 = vmul.f32 %v901, %v901
        %v944 = vmul.f32 %v902, %v902
        %v945 = vmul.f32 %v903, %v903
        %946 = vadd.xlane.f32.xlu0 %v942
        %v947 = vpop.xlane.xlu0 %946
        %948 = vadd.xlane.f32.xlu0 %v943
        %v949 = vpop.xlane.xlu0 %948
        %950 = vadd.xlane.f32.xlu0 %v944
        %v951 = vpop.xlane.xlu0 %950
        %952 = vadd.xlane.f32.xlu0 %v945
        %v953 = vpop.xlane.xlu0 %952
        %v954 = vadd.f32 %v938, %v947
        %v955 = vadd.f32 %v939, %v949
        %v956 = vadd.f32 %v940, %v951
        %v957 = vadd.f32 %v941, %v953
        %958 = vst.msk [vmem:[%s506] sm:$0xff] %vm933, %v954
        %959 = vst.msk [vmem:[%s506 + $0x8] sm:$0xff] %vm933, %v955
        %960 = vst.msk [vmem:[%s506 + $0x10] sm:$0xff] %vm933, %v956
        %961 = vst.msk [vmem:[%s506 + $0x18] sm:$0xff] %vm933, %v957
        %s962 = sand.u32 %s249, 1
        %s963 = scalar_lea.sflag [#allocation3], %s962
        %s964 = sand.u32 %s249, 1
        %s965 = smul.addr %s964, 16
        %s966 = scalar_lea.vmem [#allocation2], %s965
        %s967 = sand.u32 %s31, 1
        %s968 = scalar_lea.sflag [#allocation5], %s967
        %s969 = sand.u32 %s277, 1
        %s970 = smul.addr %s969, 16
        %s971 = scalar_lea.vmem [#allocation4], %s970
        %s972 = sand.u32 %s31, 1
        %s973 = scalar_lea.sflag [#allocation5], %s972
        %s974 = sand.u32 %s305, 1
        %s975 = smul.addr %s974, 8
        %s976 = scalar_lea.vmem [#allocation6], %s975
        %p977 = scmp.lt.s32.totalorder %s35, 1
        %s978 = scalar_select %p977, %s35, 1
        %s979 = smul.addr %s978, 4
        %s980 = smul.addr %s979, 8
        %s981 = scalar_lea.vmem %s12, %s980
        %p982 = scmp.lt.s32.totalorder %s35, 1
        %s983 = scalar_select %p982, %s35, 1
        %s984 = smul.addr %s983, 4
        %s985 = smul.addr %s984, 8
        %s986 = scalar_lea.vmem %s13, %s985
        // Predicated region
        $region61: #{tpu_custom_call.1} parent=55 // pred_check
          %p987 = pneg %p259
        $region62: #{tpu_custom_call.1} parent=55 // pred_check_branch
          %989 = sbr.rel (%p987) target = $region64
        $region63: #{tpu_custom_call.1} parent=55 // pred_region
          %s991 = ssub.s32 256, 256
          %992 = vsyncadd %s963, %s991
          %s993 = smul.addr %s35, 4
          %s994 = sadd.s32 %s36, %s993
          %s995 = smul.addr %s994, 64
          %s996 = scalar_lea.hbm %s9, %s995
          %s997 = sshll.u32 %s966, 4
          %s998 = int_to_ptr.vmem [resolvable:$true] %s997
          %1003 = dma.vmem_to_hbm [thread:$0]  %s998, 256, %s996, %s963, 64, 64, 4
        $region64: #{tpu_custom_call.1} parent=55 // pred_fallthru
          _
        // Predicated region
        $region65: #{tpu_custom_call.1} parent=55 // pred_check
          %p1004 = pneg %p287
        $region66: #{tpu_custom_call.1} parent=55 // pred_check_branch
          %1006 = sbr.rel (%p1004) target = $region68
        $region67: #{tpu_custom_call.1} parent=55 // pred_region
          %s1008 = ssub.s32 256, 256
          %1009 = vsyncadd %s968, %s1008
          %s1010 = smul.addr %s35, 4
          %s1011 = sadd.s32 %s36, %s1010
          %s1012 = smul.addr %s1011, 64
          %s1013 = scalar_lea.hbm %s10, %s1012
          %s1014 = sshll.u32 %s971, 4
          %s1015 = int_to_ptr.vmem [resolvable:$true] %s1014
          %1020 = dma.vmem_to_hbm [thread:$0]  %s1015, 256, %s1013, %s968, 64, 64, 4
        $region68: #{tpu_custom_call.1} parent=55 // pred_fallthru
          _
        // Predicated region
        $region69: #{tpu_custom_call.1} parent=55 // pred_check
          %p1021 = pneg %p315
        $region70: #{tpu_custom_call.1} parent=55 // pred_check_branch
          %1023 = sbr.rel (%p1021) target = $region72
        $region71: #{tpu_custom_call.1} parent=55 // pred_region
          %s1025 = ssub.s32 128, 128
          %1026 = vsyncadd %s973, %s1025
          %s1027 = sadd.s32 %s36, %s35
          %s1028 = smul.addr %s1027, 128
          %s1029 = scalar_lea.hbm %s11, %s1028
          %s1031 = sshll.u32 %s976, 4
          %s1032 = int_to_ptr.vmem [resolvable:$true] %s1031
          %1034 = dma.vmem_to_hbm [thread:$0]  %s1032, 128, %s1029, %s973
        $region72: #{tpu_custom_call.1} parent=55 // pred_fallthru
          _
        // Predicated region
        $region73: #{tpu_custom_call.1} parent=55 // pred_check
          %p1035 = pneg %p341
        $region74: #{tpu_custom_call.1} parent=55 // pred_check_branch
          %1037 = sbr.rel (%p1035) target = $region76
        $region75: #{tpu_custom_call.1} parent=55 // pred_region
          _
        $region76: #{tpu_custom_call.1} parent=55 // pred_fallthru
          _
        // Predicated region
        $region77: #{tpu_custom_call.1} parent=55 // pred_check
          %p1038 = pneg %p367
        $region78: #{tpu_custom_call.1} parent=55 // pred_check_branch
          %1040 = sbr.rel (%p1038) target = $region80
        $region79: #{tpu_custom_call.1} parent=55 // pred_region
          _
        $region80: #{tpu_custom_call.1} parent=55 // pred_fallthru
          _
      $region56: #{tpu_custom_call.1} parent=5 // pred_fallthru
        _
      %p1041 = scmp.le.s32.totalorder 2, %s26
      // Predicated region
      $region81: #{tpu_custom_call.1} parent=5 // pred_check
        %p1042 = pneg %p1041
      $region82: #{tpu_custom_call.1} parent=5 // pred_check_branch
        %1044 = sbr.rel (%p1042) target = $region84
      $region83: #{tpu_custom_call.1} parent=5 // pred_region
        %s1045 = ssub.s32 %s26, 2
        // Predicated region
        $region85: #{tpu_custom_call.1} parent=83 // pred_check
          %p1046 = pneg %p265
        $region86: #{tpu_custom_call.1} parent=83 // pred_check_branch
          %1048 = sbr.rel (%p1046) target = $region88
        $region87: #{tpu_custom_call.1} parent=83 // pred_region
          %s1049 = sand.u32 %s250, 1
          %s1050 = scalar_lea.sflag [#allocation3], %s1049
          %s1051 = sand.u32 %s250, 1
          %s1052 = smul.addr %s1051, 16
          %s1053 = scalar_lea.vmem [#allocation2], %s1052
          %1054 = dma.done %s1050, 256
        $region88: #{tpu_custom_call.1} parent=83 // pred_fallthru
          _
        // Predicated region
        $region89: #{tpu_custom_call.1} parent=83 // pred_check
          %p1055 = pneg %p293
        $region90: #{tpu_custom_call.1} parent=83 // pred_check_branch
          %1057 = sbr.rel (%p1055) target = $region92
        $region91: #{tpu_custom_call.1} parent=83 // pred_region
          %s1058 = sand.u32 %s32, 1
          %s1059 = scalar_lea.sflag [#allocation5], %s1058
          %s1060 = sand.u32 %s278, 1
          %s1061 = smul.addr %s1060, 16
          %s1062 = scalar_lea.vmem [#allocation4], %s1061
          %1063 = dma.done %s1059, 256
        $region92: #{tpu_custom_call.1} parent=83 // pred_fallthru
          _
        // Predicated region
        $region93: #{tpu_custom_call.1} parent=83 // pred_check
          %p1064 = pneg %p321
        $region94: #{tpu_custom_call.1} parent=83 // pred_check_branch
          %1066 = sbr.rel (%p1064) target = $region96
        $region95: #{tpu_custom_call.1} parent=83 // pred_region
          %s1067 = sand.u32 %s32, 1
          %s1068 = scalar_lea.sflag [#allocation5], %s1067
          %s1069 = sand.u32 %s306, 1
          %s1070 = smul.addr %s1069, 8
          %s1071 = scalar_lea.vmem [#allocation6], %s1070
          %1072 = dma.done %s1068, 128
        $region96: #{tpu_custom_call.1} parent=83 // pred_fallthru
          _
        // Predicated region
        $region97: #{tpu_custom_call.1} parent=83 // pred_check
          %p1073 = pneg %p347
        $region98: #{tpu_custom_call.1} parent=83 // pred_check_branch
          %1075 = sbr.rel (%p1073) target = $region100
        $region99: #{tpu_custom_call.1} parent=83 // pred_region
          %p1076 = scmp.lt.s32.totalorder %s37, 1
          %s1077 = scalar_select %p1076, %s37, 1
          %s1078 = smul.addr %s1077, 4
          %s1079 = smul.addr %s1078, 8
          %s1080 = scalar_lea.vmem %s12, %s1079
        $region100: #{tpu_custom_call.1} parent=83 // pred_fallthru
          _
        // Predicated region
        $region101: #{tpu_custom_call.1} parent=83 // pred_check
          %p1081 = pneg %p373
        $region102: #{tpu_custom_call.1} parent=83 // pred_check_branch
          %1083 = sbr.rel (%p1081) target = $region104
        $region103: #{tpu_custom_call.1} parent=83 // pred_region
          %p1084 = scmp.lt.s32.totalorder %s37, 1
          %s1085 = scalar_select %p1084, %s37, 1
          %s1086 = smul.addr %s1085, 4
          %s1087 = smul.addr %s1086, 8
          %s1088 = scalar_lea.vmem %s13, %s1087
        $region104: #{tpu_custom_call.1} parent=83 // pred_fallthru
          _
      $region84: #{tpu_custom_call.1} parent=5 // pred_fallthru
        _
    $region6: #{tpu_custom_call.1} parent=1 // loop_footer
      %s30 = sadd.s32 1, %s26
    $region7: #{tpu_custom_call.1} parent=1 // loop_footer_branch
      %25 = sbr.rel target = $region3
    $region8: #{tpu_custom_call.1} parent=1 // loop_exit
      _
    %1089 = vsyncpa [#allocation3], 1
    %s1090 = scalar_lea.sflag [#allocation3], 1
    %1091 = vsyncpa %s1090, 1
    %1092 = vsyncpa [#allocation5], 1
    %s1093 = scalar_lea.sflag [#allocation5], 1
    %1094 = vsyncpa %s1093, 1

</llo_original>
